<compile_context>
chip_gen: v7x
topology: tpu7x:2x2x1
jax: 0.10.0
libtpu: 0.0.40
codegen_flags: <defaults>
</compile_context>

<pallas_src>
import functools
import math

import jax
import jax.numpy as jnp
from jax import lax
from jax.experimental import pallas as pl
from jax.experimental.pallas import tpu as pltpu

LN_EPS = 1e-5   # PyTorch LayerNorm default
LANE = 128


def _round_up(x, m):
    return (x + m - 1) // m * m


def _layer_norm(x, gamma, beta):
    mu = jnp.mean(x, axis=-1, keepdims=True)
    var = jnp.mean(jnp.square(x - mu), axis=-1, keepdims=True)
    return (x - mu) * lax.rsqrt(var + LN_EPS) * gamma + beta


# ----------------------------------------------------------------------------
# Fused Pallas kernel: full encoder stack + logits projection (one batch elem)
# ----------------------------------------------------------------------------
def _fused_transformer_kernel(x_ref,
                              wqkv_ref, bqkv_ref, wo_ref, bo_ref,
                              g1_ref, be1_ref, w1_ref, b1_ref,
                              w2_ref, b2_ref, g2_ref, be2_ref,
                              wout_ref, o_ref,
                              *, nhead, head_dim, nlayers, has_mask):
    x = x_ref[...].astype(jnp.float32)                    # [S, E]
    S, E = x.shape

    # Causal mask built in-kernel (VPU compare+select; no HBM input / DMA).
    if has_mask:
        row = lax.broadcasted_iota(jnp.int32, (S, S), 0)
        col = lax.broadcasted_iota(jnp.int32, (S, S), 1)
        neg_mask = jnp.where(col > row, -1e30, 0.0).astype(jnp.float32)

    for l in range(nlayers):                              # static unroll (L small)
        # ---- fused QKV projection: single [S,E] @ [E,3E] MXU matmul --------
        # (1/sqrt(head_dim) already folded into the Q columns / Q bias)
        qkv = jnp.dot(x.astype(jnp.bfloat16), wqkv_ref[l],
                      preferred_element_type=jnp.float32) + bqkv_ref[l]   # [S,3E]

        # ---- heads batched on a leading axis: [H, S, Dh] --------------------
        def heads(base, _qkv=qkv):
            return jnp.stack(
                [_qkv[:, base + h * head_dim: base + (h + 1) * head_dim]
                 for h in range(nhead)], axis=0)
        q = heads(0).astype(jnp.bfloat16)
        k = heads(E).astype(jnp.bfloat16)
        v = heads(2 * E).astype(jnp.bfloat16)

        s = jnp.einsum('hqd,hkd->hqk', q, k,
                       preferred_element_type=jnp.float32)                # [H,S,S]
        if has_mask:
            s = s + neg_mask[None]
        m = jnp.max(s, axis=-1, keepdims=True)
        p = jnp.exp(s - m)
        p = p * pl.reciprocal(jnp.sum(p, axis=-1, keepdims=True), approx=True)
        ctx = jnp.einsum('hqk,hkd->hqd', p.astype(jnp.bfloat16), v,
                         preferred_element_type=jnp.float32)              # [H,S,Dh]

        # ---- concat heads on lanes, single fused output projection ----------
        ctx = jnp.concatenate([ctx[h] for h in range(nhead)], axis=-1)    # [S, E]
        attn = jnp.dot(ctx.astype(jnp.bfloat16), wo_ref[l],
                       preferred_element_type=jnp.float32) + bo_ref[l]

        # ---- residual + LN1 (post-norm), ReLU FFN, residual + LN2 (f32) -----
        x1 = _layer_norm(x + attn, g1_ref[l], be1_ref[l])
        h1 = jnp.maximum(
            jnp.dot(x1.astype(jnp.bfloat16), w1_ref[l],
                    preferred_element_type=jnp.float32) + b1_ref[l], 0.0)
        ff = jnp.dot(h1.astype(jnp.bfloat16), w2_ref[l],
                     preferred_element_type=jnp.float32) + b2_ref[l]
        x = _layer_norm(x1 + ff, g2_ref[l], be2_ref[l])

    # ---- final logits projection against lane-padded vertex_emb.T ----------
    o_ref[...] = jnp.dot(x.astype(jnp.bfloat16), wout_ref[...],
                         preferred_element_type=jnp.float32)              # [S,Vp]


# ----------------------------------------------------------------------------
# Pallas wrapper
# ----------------------------------------------------------------------------
def _const_spec(a):
    nd = a.ndim
    return pl.BlockSpec(a.shape, lambda b, _z=(0,) * nd: _z)


def fused_forward(x, params, nhead, has_mask):
    """x: [B, S, E] f32 -> lane-padded logits [B, S, Vp] f32."""
    B, S, E = x.shape
    head_dim = E // nhead
    nlayers = params["wqkv"].shape[0]
    Vp = params["wout_pad"].shape[1]

    weights = (params["wqkv"], params["bqkv"], params["wo"], params["bo"],
               params["g1"], params["be1"], params["w1"], params["b1"],
               params["w2"], params["b2"], params["g2"], params["be2"],
               params["wout_pad"])
    kernel = functools.partial(_fused_transformer_kernel, nhead=nhead,
                               head_dim=head_dim, nlayers=nlayers,
                               has_mask=has_mask)
    return pl.pallas_call(
        kernel,
        grid=(B,),
        in_specs=[pl.BlockSpec((None, S, E), lambda b: (b, 0, 0))]
                 + [_const_spec(a) for a in weights],
        out_specs=pl.BlockSpec((None, S, Vp), lambda b: (b, 0, 0)),
        out_shape=jax.ShapeDtypeStruct((B, S, Vp), jnp.float32),
        compiler_params=pltpu.CompilerParams(
            dimension_semantics=("parallel",)),      # 2 TCs on v7x get one batch each
    )(x, *weights)


def transformer_forward(tokens, params, nhead, has_mask=True):
    """tokens: int32 [S, B]  ->  logits float32 [S, B, ntoken]."""
    W_vert = params["vertex_emb"]
    ntoken = W_vert.shape[0]
    S, B = tokens.shape

    # Embedding gathers + positional-id sums (plain-JAX glue: data-dependent
    # gathers of a tiny table are not worth a manual DMA gather here).
    ids = jnp.arange(1, S + 1)
    x = W_vert[tokens]                                      # [S, B, E]
    x = x + params["ind_emb"][ids % 2][:, None, :]
    x = x + params["pos_emb"][ids // 2][:, None, :]         # pos table has 50 rows -> valid for S <= 99
    # self.drop / attention & FFN dropouts are identity in eval mode.

    x = jnp.transpose(x, (1, 0, 2)).astype(jnp.float32)     # [B, S, E]
    logits_p = fused_forward(x, params, nhead, has_mask)    # [B, S, Vp]
    logits = logits_p[:, :, :ntoken]                        # drop lane padding
    return jnp.transpose(logits, (1, 0, 2))                 # [S, B, ntoken]


# ----------------------------------------------------------------------------
# Deterministic parameter init (normal(0, 0.01) weights, zero biases, LN=1/0),
# pre-packed into the stacked / transposed / bf16 layouts the kernel consumes.
# ----------------------------------------------------------------------------
def init_params(key, ntoken, ninp, nhead, nhid, nlayers):
    std = 0.01
    head_dim = ninp // nhead
    scale = 1.0 / math.sqrt(head_dim)
    keys = jax.random.split(key, 3 + nlayers)

    vertex_emb = jax.random.normal(keys[0], (ntoken, ninp), jnp.float32) * std
    pos_emb = jax.random.normal(keys[1], (50, ninp), jnp.float32) * std
    ind_emb = jax.random.normal(keys[2], (2, ninp), jnp.float32) * std

    wqkv, wo, w1, w2 = [], [], [], []
    for li in range(nlayers):
        k = jax.random.split(keys[3 + li], 6)
        # PyTorch-convention weights: [out_features, in_features]
        wq = jax.random.normal(k[0], (ninp, ninp), jnp.float32) * std
        wk = jax.random.normal(k[1], (ninp, ninp), jnp.float32) * std
        wv = jax.random.normal(k[2], (ninp, ninp), jnp.float32) * std
        wo_l = jax.random.normal(k[3], (ninp, ninp), jnp.float32) * std
        w1_l = jax.random.normal(k[4], (nhid, ninp), jnp.float32) * std
        w2_l = jax.random.normal(k[5], (ninp, nhid), jnp.float32) * std
        # Fused QKV ([E, 3E]); 1/sqrt(head_dim) folded into the Q columns.
        wqkv.append(jnp.concatenate([wq.T * scale, wk.T, wv.T], axis=1))
        wo.append(wo_l.T)     # [E, E]  (concat-heads -> out_proj)
        w1.append(w1_l.T)     # [E, nhid]
        w2.append(w2_l.T)     # [nhid, E]

    ntoken_pad = _round_up(ntoken, LANE)   # lane-dense logits output
    wout_pad = jnp.zeros((ninp, ntoken_pad), jnp.float32).at[:, :ntoken].set(
        vertex_emb.T)

    z = lambda *s: jnp.zeros(s, jnp.float32)
    o = lambda *s: jnp.ones(s, jnp.float32)
    params = {
        "vertex_emb": vertex_emb,
        "pos_emb": pos_emb,
        "ind_emb": ind_emb,
        # Stacked per-layer weights.  Matmul operands stored in bf16 (MXU path
        # on v5e/v6e/v7x); biases / LayerNorm params stay f32 (VPU path).
        "wqkv": jnp.stack(wqkv).astype(jnp.bfloat16),   # [L, E, 3E]
        "bqkv": z(nlayers, 1, 3 * ninp),                # (q-scale fold is a no-op on zero bias)
        "wo":   jnp.stack(wo).astype(jnp.bfloat16),     # [L, E, E]
        "bo":   z(nlayers, 1, ninp),
        "g1":   o(nlayers, 1, ninp),
        "be1":  z(nlayers, 1, ninp),
        "w1":   jnp.stack(w1).astype(jnp.bfloat16),     # [L, E, nhid]
        "b1":   z(nlayers, 1, nhid),
        "w2":   jnp.stack(w2).astype(jnp.bfloat16),     # [L, nhid, E]
        "b2":   z(nlayers, 1, ninp),
        "g2":   o(nlayers, 1, ninp),
        "be2":  z(nlayers, 1, ninp),
        "wout_pad": wout_pad.astype(jnp.bfloat16),      # [E, Vp]
    }
    return params


# ----------------------------------------------------------------------------
if __name__ == "__main__":
    ntoken, ninp, nhead, nhid, nlayers = 16, 32, 2, 64, 2
    S, B = 8, 2

    key = jax.random.PRNGKey(0)
    pkey, tkey = jax.random.split(key)
    params = init_params(pkey, ntoken, ninp, nhead, nhid, nlayers)
    tokens = jax.random.randint(tkey, (S, B), 0, ntoken, dtype=jnp.int32)

    out = transformer_forward(tokens, params, nhead, has_mask=True)
    out = jax.block_until_ready(out)

    assert out.shape == (S, B, ntoken), out.shape
    assert bool(jnp.all(jnp.isfinite(out)))
    # TODO(synk): for realistic S, replace the in-kernel [S,S] score matrix with
    # a flash-style online-softmax over KV tiles (causal-skip) to bound VMEM.
    print("KERNEL_OK")
</pallas_src>

<mosaic_0001>
module attributes {stable_mosaic.version = 11 : i64} {
  func.func @_fused_transformer_kernel(%arg0: i32, %arg1: memref<1x8x32xf32, #tpu.memory_space<vmem>>, %arg2: memref<2x32x96xbf16, #tpu.memory_space<vmem>>, %arg3: memref<2x1x96xf32, #tpu.memory_space<vmem>>, %arg4: memref<2x32x32xbf16, #tpu.memory_space<vmem>>, %arg5: memref<2x1x32xf32, #tpu.memory_space<vmem>>, %arg6: memref<2x1x32xf32, #tpu.memory_space<vmem>>, %arg7: memref<2x1x32xf32, #tpu.memory_space<vmem>>, %arg8: memref<2x32x64xbf16, #tpu.memory_space<vmem>>, %arg9: memref<2x1x64xf32, #tpu.memory_space<vmem>>, %arg10: memref<2x64x32xbf16, #tpu.memory_space<vmem>>, %arg11: memref<2x1x32xf32, #tpu.memory_space<vmem>>, %arg12: memref<2x1x32xf32, #tpu.memory_space<vmem>>, %arg13: memref<2x1x32xf32, #tpu.memory_space<vmem>>, %arg14: memref<32x128xbf16, #tpu.memory_space<vmem>>, %arg15: memref<1x8x128xf32, #tpu.memory_space<vmem>>) attributes {dimension_semantics = [#tpu.dimension_semantics<parallel>], iteration_bounds = array<i64: 2>, scalar_prefetch = 0 : i64, scratch_operands = 0 : i64, tpu.core_type = #tpu.core_type<tc>, window_params = [{transform_indices = @transform_0, window_bounds = array<i64: 1, 8, 32>}, {pipeline_mode = #tpu.pipeline_mode<synchronous>, transform_indices = @transform_1, window_bounds = array<i64: 2, 32, 96>}, {pipeline_mode = #tpu.pipeline_mode<synchronous>, transform_indices = @transform_2, window_bounds = array<i64: 2, 1, 96>}, {pipeline_mode = #tpu.pipeline_mode<synchronous>, transform_indices = @transform_3, window_bounds = array<i64: 2, 32, 32>}, {pipeline_mode = #tpu.pipeline_mode<synchronous>, transform_indices = @transform_4, window_bounds = array<i64: 2, 1, 32>}, {pipeline_mode = #tpu.pipeline_mode<synchronous>, transform_indices = @transform_5, window_bounds = array<i64: 2, 1, 32>}, {pipeline_mode = #tpu.pipeline_mode<synchronous>, transform_indices = @transform_6, window_bounds = array<i64: 2, 1, 32>}, {pipeline_mode = #tpu.pipeline_mode<synchronous>, transform_indices = @transform_7, window_bounds = array<i64: 2, 32, 64>}, {pipeline_mode = #tpu.pipeline_mode<synchronous>, transform_indices = @transform_8, window_bounds = array<i64: 2, 1, 64>}, {pipeline_mode = #tpu.pipeline_mode<synchronous>, transform_indices = @transform_9, window_bounds = array<i64: 2, 64, 32>}, {pipeline_mode = #tpu.pipeline_mode<synchronous>, transform_indices = @transform_10, window_bounds = array<i64: 2, 1, 32>}, {pipeline_mode = #tpu.pipeline_mode<synchronous>, transform_indices = @transform_11, window_bounds = array<i64: 2, 1, 32>}, {pipeline_mode = #tpu.pipeline_mode<synchronous>, transform_indices = @transform_12, window_bounds = array<i64: 2, 1, 32>}, {pipeline_mode = #tpu.pipeline_mode<synchronous>, transform_indices = @transform_13, window_bounds = array<i64: 32, 128>}, {transform_indices = @transform_14, window_bounds = array<i64: 1, 8, 128>}]} {
    %c0 = arith.constant 0 : index
    %c0_0 = arith.constant 0 : index
    %c0_1 = arith.constant 0 : index
    %0 = vector.load %arg1[%c0, %c0_0, %c0_1] : memref<1x8x32xf32, #tpu.memory_space<vmem>>, vector<1x8x32xf32>
    %1 = vector.shape_cast %0 : vector<1x8x32xf32> to vector<8x32xf32>
    %2 = tpu.iota {dimensions = array<i32: 0>} : vector<8x8xi32>
    %3 = tpu.iota {dimensions = array<i32: 1>} : vector<8x8xi32>
    %4 = arith.cmpi sgt, %3, %2 : vector<8x8xi32>
    %cst = arith.constant -1.000000e+30 : f32
    %cst_2 = arith.constant 0.000000e+00 : f32
    %5 = vector.broadcast %cst : f32 to vector<8x8xf32>
    %6 = vector.broadcast %cst_2 : f32 to vector<8x8xf32>
    %7 = arith.select %4, %5, %6 : vector<8x8xi1>, vector<8x8xf32>
    %8 = arith.truncf %1 : vector<8x32xf32> to vector<8x32xbf16>
    %c0_3 = arith.constant 0 : index
    %c0_4 = arith.constant 0 : index
    %c0_5 = arith.constant 0 : index
    %9 = vector.load %arg2[%c0_3, %c0_4, %c0_5] : memref<2x32x96xbf16, #tpu.memory_space<vmem>>, vector<1x32x96xbf16>
    %10 = vector.shape_cast %9 : vector<1x32x96xbf16> to vector<32x96xbf16>
    %cst_6 = arith.constant dense<0.000000e+00> : vector<8x96xf32>
    %11 = tpu.matmul %8, %10, %cst_6 {dimension_numbers = #tpu.dot_dimension_numbers<[1], [0], [0], [1], [0, 0, 1, 1], [], []>} : vector<8x32xbf16>, vector<32x96xbf16>, vector<8x96xf32> -> vector<8x96xf32>
    %c0_7 = arith.constant 0 : index
    %c0_8 = arith.constant 0 : index
    %c0_9 = arith.constant 0 : index
    %12 = vector.load %arg3[%c0_7, %c0_8, %c0_9] : memref<2x1x96xf32, #tpu.memory_space<vmem>>, vector<1x1x96xf32>
    %13 = vector.shape_cast %12 : vector<1x1x96xf32> to vector<1x96xf32>
    %14 = vector.broadcast %13 : vector<1x96xf32> to vector<8x96xf32>
    %15 = arith.addf %11, %14 : vector<8x96xf32>
    %16 = vector.extract_strided_slice %15 {offsets = [0, 0], sizes = [8, 16], strides = [1, 1]} : vector<8x96xf32> to vector<8x16xf32>
    %17 = vector.extract_strided_slice %15 {offsets = [0, 16], sizes = [8, 16], strides = [1, 1]} : vector<8x96xf32> to vector<8x16xf32>
    %18 = vector.shape_cast %16 : vector<8x16xf32> to vector<1x8x16xf32>
    %19 = vector.shape_cast %17 : vector<8x16xf32> to vector<1x8x16xf32>
    %20 = tpu.concatenate %18, %19 in 0 : vector<1x8x16xf32>, vector<1x8x16xf32> -> vector<2x8x16xf32>
    %21 = arith.truncf %20 : vector<2x8x16xf32> to vector<2x8x16xbf16>
    %22 = vector.extract_strided_slice %15 {offsets = [0, 32], sizes = [8, 16], strides = [1, 1]} : vector<8x96xf32> to vector<8x16xf32>
    %23 = vector.extract_strided_slice %15 {offsets = [0, 48], sizes = [8, 16], strides = [1, 1]} : vector<8x96xf32> to vector<8x16xf32>
    %24 = vector.shape_cast %22 : vector<8x16xf32> to vector<1x8x16xf32>
    %25 = vector.shape_cast %23 : vector<8x16xf32> to vector<1x8x16xf32>
    %26 = tpu.concatenate %24, %25 in 0 : vector<1x8x16xf32>, vector<1x8x16xf32> -> vector<2x8x16xf32>
    %27 = arith.truncf %26 : vector<2x8x16xf32> to vector<2x8x16xbf16>
    %28 = vector.extract_strided_slice %15 {offsets = [0, 64], sizes = [8, 16], strides = [1, 1]} : vector<8x96xf32> to vector<8x16xf32>
    %29 = vector.extract_strided_slice %15 {offsets = [0, 80], sizes = [8, 16], strides = [1, 1]} : vector<8x96xf32> to vector<8x16xf32>
    %30 = vector.shape_cast %28 : vector<8x16xf32> to vector<1x8x16xf32>
    %31 = vector.shape_cast %29 : vector<8x16xf32> to vector<1x8x16xf32>
    %32 = tpu.concatenate %30, %31 in 0 : vector<1x8x16xf32>, vector<1x8x16xf32> -> vector<2x8x16xf32>
    %33 = arith.truncf %32 : vector<2x8x16xf32> to vector<2x8x16xbf16>
    "tpu.trace_start"() <{level = 10 : i32, message = "hqd,hkd->hqk"}> : () -> ()
    %cst_10 = arith.constant dense<0.000000e+00> : vector<2x8x8xf32>
    %34 = tpu.matmul %21, %27, %cst_10 {dimension_numbers = #tpu.dot_dimension_numbers<[2], [2], [1], [1], [0, 0, 0, 1, 1, 1], [0], [0]>} : vector<2x8x16xbf16>, vector<2x8x16xbf16>, vector<2x8x8xf32> -> vector<2x8x8xf32>
    "tpu.trace_stop"() : () -> ()
    %35 = vector.shape_cast %7 : vector<8x8xf32> to vector<1x8x8xf32>
    %36 = vector.broadcast %35 : vector<1x8x8xf32> to vector<2x8x8xf32>
    %37 = arith.addf %34, %36 : vector<2x8x8xf32>
    %cst_11 = arith.constant dense<0xFF800000> : vector<2x8xf32>
    %38 = vector.multi_reduction <maximumf>, %37, %cst_11 [2] : vector<2x8x8xf32> to vector<2x8xf32>
    %39 = vector.shape_cast %38 : vector<2x8xf32> to vector<2x8x1xf32>
    %40 = vector.broadcast %39 : vector<2x8x1xf32> to vector<2x8x8xf32>
    %41 = arith.subf %37, %40 : vector<2x8x8xf32>
    %42 = math.exp %41 : vector<2x8x8xf32>
    %cst_12 = arith.constant dense<0.000000e+00> : vector<2x8xf32>
    %43 = vector.multi_reduction <add>, %42, %cst_12 [2] : vector<2x8x8xf32> to vector<2x8xf32>
    %44 = vector.shape_cast %43 : vector<2x8xf32> to vector<2x8x1xf32>
    %45 = tpu.reciprocal %44 {approx = true} : vector<2x8x1xf32> -> vector<2x8x1xf32>
    %46 = vector.broadcast %45 : vector<2x8x1xf32> to vector<2x8x8xf32>
    %47 = arith.mulf %42, %46 : vector<2x8x8xf32>
    %48 = arith.truncf %47 : vector<2x8x8xf32> to vector<2x8x8xbf16>
    "tpu.trace_start"() <{level = 10 : i32, message = "hqk,hkd->hqd"}> : () -> ()
    %cst_13 = arith.constant dense<0.000000e+00> : vector<2x8x16xf32>
    %49 = tpu.matmul %48, %33, %cst_13 {dimension_numbers = #tpu.dot_dimension_numbers<[2], [1], [1], [2], [0, 0, 0, 1, 1, 2], [0], [0]>} : vector<2x8x8xbf16>, vector<2x8x16xbf16>, vector<2x8x16xf32> -> vector<2x8x16xf32>
    "tpu.trace_stop"() : () -> ()
    %50 = vector.extract_strided_slice %49 {offsets = [0, 0, 0], sizes = [1, 8, 16], strides = [1, 1, 1]} : vector<2x8x16xf32> to vector<1x8x16xf32>
    %51 = vector.shape_cast %50 : vector<1x8x16xf32> to vector<8x16xf32>
    %52 = vector.extract_strided_slice %49 {offsets = [1, 0, 0], sizes = [1, 8, 16], strides = [1, 1, 1]} : vector<2x8x16xf32> to vector<1x8x16xf32>
    %53 = vector.shape_cast %52 : vector<1x8x16xf32> to vector<8x16xf32>
    %54 = tpu.concatenate %51, %53 in 1 : vector<8x16xf32>, vector<8x16xf32> -> vector<8x32xf32>
    %55 = arith.truncf %54 : vector<8x32xf32> to vector<8x32xbf16>
    %c0_14 = arith.constant 0 : index
    %c0_15 = arith.constant 0 : index
    %c0_16 = arith.constant 0 : index
    %56 = vector.load %arg4[%c0_14, %c0_15, %c0_16] : memref<2x32x32xbf16, #tpu.memory_space<vmem>>, vector<1x32x32xbf16>
    %57 = vector.shape_cast %56 : vector<1x32x32xbf16> to vector<32x32xbf16>
    %cst_17 = arith.constant dense<0.000000e+00> : vector<8x32xf32>
    %58 = tpu.matmul %55, %57, %cst_17 {dimension_numbers = #tpu.dot_dimension_numbers<[1], [0], [0], [1], [0, 0, 1, 1], [], []>} : vector<8x32xbf16>, vector<32x32xbf16>, vector<8x32xf32> -> vector<8x32xf32>
    %c0_18 = arith.constant 0 : index
    %c0_19 = arith.constant 0 : index
    %c0_20 = arith.constant 0 : index
    %59 = vector.load %arg5[%c0_18, %c0_19, %c0_20] : memref<2x1x32xf32, #tpu.memory_space<vmem>>, vector<1x1x32xf32>
    %60 = vector.shape_cast %59 : vector<1x1x32xf32> to vector<1x32xf32>
    %61 = vector.broadcast %60 : vector<1x32xf32> to vector<8x32xf32>
    %62 = arith.addf %58, %61 : vector<8x32xf32>
    %63 = arith.addf %1, %62 : vector<8x32xf32>
    %c0_21 = arith.constant 0 : index
    %c0_22 = arith.constant 0 : index
    %c0_23 = arith.constant 0 : index
    %64 = vector.load %arg6[%c0_21, %c0_22, %c0_23] : memref<2x1x32xf32, #tpu.memory_space<vmem>>, vector<1x1x32xf32>
    %65 = vector.shape_cast %64 : vector<1x1x32xf32> to vector<1x32xf32>
    %c0_24 = arith.constant 0 : index
    %c0_25 = arith.constant 0 : index
    %c0_26 = arith.constant 0 : index
    %66 = vector.load %arg7[%c0_24, %c0_25, %c0_26] : memref<2x1x32xf32, #tpu.memory_space<vmem>>, vector<1x1x32xf32>
    %67 = vector.shape_cast %66 : vector<1x1x32xf32> to vector<1x32xf32>
    %cst_27 = arith.constant dense<0.000000e+00> : vector<8xf32>
    %68 = vector.multi_reduction <add>, %63, %cst_27 [1] : vector<8x32xf32> to vector<8xf32>
    %69 = vector.shape_cast %68 : vector<8xf32> to vector<8x1xf32>
    %cst_28 = arith.constant 3.200000e+01 : f32
    %70 = vector.broadcast %cst_28 : f32 to vector<8x1xf32>
    %71 = arith.divf %69, %70 : vector<8x1xf32>
    %72 = vector.broadcast %71 : vector<8x1xf32> to vector<8x32xf32>
    %73 = arith.subf %63, %72 : vector<8x32xf32>
    %74 = arith.mulf %73, %73 : vector<8x32xf32>
    %cst_29 = arith.constant dense<0.000000e+00> : vector<8xf32>
    %75 = vector.multi_reduction <add>, %74, %cst_29 [1] : vector<8x32xf32> to vector<8xf32>
    %76 = vector.shape_cast %75 : vector<8xf32> to vector<8x1xf32>
    %cst_30 = arith.constant 3.200000e+01 : f32
    %77 = vector.broadcast %cst_30 : f32 to vector<8x1xf32>
    %78 = arith.divf %76, %77 : vector<8x1xf32>
    %79 = vector.broadcast %71 : vector<8x1xf32> to vector<8x32xf32>
    %80 = arith.subf %63, %79 : vector<8x32xf32>
    %cst_31 = arith.constant 9.99999974E-6 : f32
    %81 = vector.broadcast %cst_31 : f32 to vector<8x1xf32>
    %82 = arith.addf %78, %81 : vector<8x1xf32>
    %83 = math.rsqrt %82 : vector<8x1xf32>
    %84 = vector.broadcast %83 : vector<8x1xf32> to vector<8x32xf32>
    %85 = arith.mulf %80, %84 : vector<8x32xf32>
    %86 = vector.broadcast %65 : vector<1x32xf32> to vector<8x32xf32>
    %87 = arith.mulf %85, %86 : vector<8x32xf32>
    %88 = vector.broadcast %67 : vector<1x32xf32> to vector<8x32xf32>
    %89 = arith.addf %87, %88 : vector<8x32xf32>
    %90 = arith.truncf %89 : vector<8x32xf32> to vector<8x32xbf16>
    %c0_32 = arith.constant 0 : index
    %c0_33 = arith.constant 0 : index
    %c0_34 = arith.constant 0 : index
    %91 = vector.load %arg8[%c0_32, %c0_33, %c0_34] : memref<2x32x64xbf16, #tpu.memory_space<vmem>>, vector<1x32x64xbf16>
    %92 = vector.shape_cast %91 : vector<1x32x64xbf16> to vector<32x64xbf16>
    %cst_35 = arith.constant dense<0.000000e+00> : vector<8x64xf32>
    %93 = tpu.matmul %90, %92, %cst_35 {dimension_numbers = #tpu.dot_dimension_numbers<[1], [0], [0], [1], [0, 0, 1, 1], [], []>} : vector<8x32xbf16>, vector<32x64xbf16>, vector<8x64xf32> -> vector<8x64xf32>
    %c0_36 = arith.constant 0 : index
    %c0_37 = arith.constant 0 : index
    %c0_38 = arith.constant 0 : index
    %94 = vector.load %arg9[%c0_36, %c0_37, %c0_38] : memref<2x1x64xf32, #tpu.memory_space<vmem>>, vector<1x1x64xf32>
    %95 = vector.shape_cast %94 : vector<1x1x64xf32> to vector<1x64xf32>
    %96 = vector.broadcast %95 : vector<1x64xf32> to vector<8x64xf32>
    %97 = arith.addf %93, %96 : vector<8x64xf32>
    %cst_39 = arith.constant 0.000000e+00 : f32
    %98 = vector.broadcast %cst_39 : f32 to vector<8x64xf32>
    %99 = arith.maximumf %97, %98 : vector<8x64xf32>
    %100 = arith.truncf %99 : vector<8x64xf32> to vector<8x64xbf16>
    %c0_40 = arith.constant 0 : index
    %c0_41 = arith.constant 0 : index
    %c0_42 = arith.constant 0 : index
    %101 = vector.load %arg10[%c0_40, %c0_41, %c0_42] : memref<2x64x32xbf16, #tpu.memory_space<vmem>>, vector<1x64x32xbf16>
    %102 = vector.shape_cast %101 : vector<1x64x32xbf16> to vector<64x32xbf16>
    %cst_43 = arith.constant dense<0.000000e+00> : vector<8x32xf32>
    %103 = tpu.matmul %100, %102, %cst_43 {dimension_numbers = #tpu.dot_dimension_numbers<[1], [0], [0], [1], [0, 0, 1, 1], [], []>} : vector<8x64xbf16>, vector<64x32xbf16>, vector<8x32xf32> -> vector<8x32xf32>
    %c0_44 = arith.constant 0 : index
    %c0_45 = arith.constant 0 : index
    %c0_46 = arith.constant 0 : index
    %104 = vector.load %arg11[%c0_44, %c0_45, %c0_46] : memref<2x1x32xf32, #tpu.memory_space<vmem>>, vector<1x1x32xf32>
    %105 = vector.shape_cast %104 : vector<1x1x32xf32> to vector<1x32xf32>
    %106 = vector.broadcast %105 : vector<1x32xf32> to vector<8x32xf32>
    %107 = arith.addf %103, %106 : vector<8x32xf32>
    %108 = arith.addf %89, %107 : vector<8x32xf32>
    %c0_47 = arith.constant 0 : index
    %c0_48 = arith.constant 0 : index
    %c0_49 = arith.constant 0 : index
    %109 = vector.load %arg12[%c0_47, %c0_48, %c0_49] : memref<2x1x32xf32, #tpu.memory_space<vmem>>, vector<1x1x32xf32>
    %110 = vector.shape_cast %109 : vector<1x1x32xf32> to vector<1x32xf32>
    %c0_50 = arith.constant 0 : index
    %c0_51 = arith.constant 0 : index
    %c0_52 = arith.constant 0 : index
    %111 = vector.load %arg13[%c0_50, %c0_51, %c0_52] : memref<2x1x32xf32, #tpu.memory_space<vmem>>, vector<1x1x32xf32>
    %112 = vector.shape_cast %111 : vector<1x1x32xf32> to vector<1x32xf32>
    %cst_53 = arith.constant dense<0.000000e+00> : vector<8xf32>
    %113 = vector.multi_reduction <add>, %108, %cst_53 [1] : vector<8x32xf32> to vector<8xf32>
    %114 = vector.shape_cast %113 : vector<8xf32> to vector<8x1xf32>
    %cst_54 = arith.constant 3.200000e+01 : f32
    %115 = vector.broadcast %cst_54 : f32 to vector<8x1xf32>
    %116 = arith.divf %114, %115 : vector<8x1xf32>
    %117 = vector.broadcast %116 : vector<8x1xf32> to vector<8x32xf32>
    %118 = arith.subf %108, %117 : vector<8x32xf32>
    %119 = arith.mulf %118, %118 : vector<8x32xf32>
    %cst_55 = arith.constant dense<0.000000e+00> : vector<8xf32>
    %120 = vector.multi_reduction <add>, %119, %cst_55 [1] : vector<8x32xf32> to vector<8xf32>
    %121 = vector.shape_cast %120 : vector<8xf32> to vector<8x1xf32>
    %cst_56 = arith.constant 3.200000e+01 : f32
    %122 = vector.broadcast %cst_56 : f32 to vector<8x1xf32>
    %123 = arith.divf %121, %122 : vector<8x1xf32>
    %124 = vector.broadcast %116 : vector<8x1xf32> to vector<8x32xf32>
    %125 = arith.subf %108, %124 : vector<8x32xf32>
    %cst_57 = arith.constant 9.99999974E-6 : f32
    %126 = vector.broadcast %cst_57 : f32 to vector<8x1xf32>
    %127 = arith.addf %123, %126 : vector<8x1xf32>
    %128 = math.rsqrt %127 : vector<8x1xf32>
    %129 = vector.broadcast %128 : vector<8x1xf32> to vector<8x32xf32>
    %130 = arith.mulf %125, %129 : vector<8x32xf32>
    %131 = vector.broadcast %110 : vector<1x32xf32> to vector<8x32xf32>
    %132 = arith.mulf %130, %131 : vector<8x32xf32>
    %133 = vector.broadcast %112 : vector<1x32xf32> to vector<8x32xf32>
    %134 = arith.addf %132, %133 : vector<8x32xf32>
    %135 = arith.truncf %134 : vector<8x32xf32> to vector<8x32xbf16>
    %c1 = arith.constant 1 : index
    %c0_58 = arith.constant 0 : index
    %c0_59 = arith.constant 0 : index
    %136 = vector.load %arg2[%c1, %c0_58, %c0_59] : memref<2x32x96xbf16, #tpu.memory_space<vmem>>, vector<1x32x96xbf16>
    %137 = vector.shape_cast %136 : vector<1x32x96xbf16> to vector<32x96xbf16>
    %cst_60 = arith.constant dense<0.000000e+00> : vector<8x96xf32>
    %138 = tpu.matmul %135, %137, %cst_60 {dimension_numbers = #tpu.dot_dimension_numbers<[1], [0], [0], [1], [0, 0, 1, 1], [], []>} : vector<8x32xbf16>, vector<32x96xbf16>, vector<8x96xf32> -> vector<8x96xf32>
    %c1_61 = arith.constant 1 : index
    %c0_62 = arith.constant 0 : index
    %c0_63 = arith.constant 0 : index
    %139 = vector.load %arg3[%c1_61, %c0_62, %c0_63] : memref<2x1x96xf32, #tpu.memory_space<vmem>>, vector<1x1x96xf32>
    %140 = vector.shape_cast %139 : vector<1x1x96xf32> to vector<1x96xf32>
    %141 = vector.broadcast %140 : vector<1x96xf32> to vector<8x96xf32>
    %142 = arith.addf %138, %141 : vector<8x96xf32>
    %143 = vector.extract_strided_slice %142 {offsets = [0, 0], sizes = [8, 16], strides = [1, 1]} : vector<8x96xf32> to vector<8x16xf32>
    %144 = vector.extract_strided_slice %142 {offsets = [0, 16], sizes = [8, 16], strides = [1, 1]} : vector<8x96xf32> to vector<8x16xf32>
    %145 = vector.shape_cast %143 : vector<8x16xf32> to vector<1x8x16xf32>
    %146 = vector.shape_cast %144 : vector<8x16xf32> to vector<1x8x16xf32>
    %147 = tpu.concatenate %145, %146 in 0 : vector<1x8x16xf32>, vector<1x8x16xf32> -> vector<2x8x16xf32>
    %148 = arith.truncf %147 : vector<2x8x16xf32> to vector<2x8x16xbf16>
    %149 = vector.extract_strided_slice %142 {offsets = [0, 32], sizes = [8, 16], strides = [1, 1]} : vector<8x96xf32> to vector<8x16xf32>
    %150 = vector.extract_strided_slice %142 {offsets = [0, 48], sizes = [8, 16], strides = [1, 1]} : vector<8x96xf32> to vector<8x16xf32>
    %151 = vector.shape_cast %149 : vector<8x16xf32> to vector<1x8x16xf32>
    %152 = vector.shape_cast %150 : vector<8x16xf32> to vector<1x8x16xf32>
    %153 = tpu.concatenate %151, %152 in 0 : vector<1x8x16xf32>, vector<1x8x16xf32> -> vector<2x8x16xf32>
    %154 = arith.truncf %153 : vector<2x8x16xf32> to vector<2x8x16xbf16>
    %155 = vector.extract_strided_slice %142 {offsets = [0, 64], sizes = [8, 16], strides = [1, 1]} : vector<8x96xf32> to vector<8x16xf32>
    %156 = vector.extract_strided_slice %142 {offsets = [0, 80], sizes = [8, 16], strides = [1, 1]} : vector<8x96xf32> to vector<8x16xf32>
    %157 = vector.shape_cast %155 : vector<8x16xf32> to vector<1x8x16xf32>
    %158 = vector.shape_cast %156 : vector<8x16xf32> to vector<1x8x16xf32>
    %159 = tpu.concatenate %157, %158 in 0 : vector<1x8x16xf32>, vector<1x8x16xf32> -> vector<2x8x16xf32>
    %160 = arith.truncf %159 : vector<2x8x16xf32> to vector<2x8x16xbf16>
    "tpu.trace_start"() <{level = 10 : i32, message = "hqd,hkd->hqk"}> : () -> ()
    %cst_64 = arith.constant dense<0.000000e+00> : vector<2x8x8xf32>
    %161 = tpu.matmul %148, %154, %cst_64 {dimension_numbers = #tpu.dot_dimension_numbers<[2], [2], [1], [1], [0, 0, 0, 1, 1, 1], [0], [0]>} : vector<2x8x16xbf16>, vector<2x8x16xbf16>, vector<2x8x8xf32> -> vector<2x8x8xf32>
    "tpu.trace_stop"() : () -> ()
    %162 = vector.shape_cast %7 : vector<8x8xf32> to vector<1x8x8xf32>
    %163 = vector.broadcast %162 : vector<1x8x8xf32> to vector<2x8x8xf32>
    %164 = arith.addf %161, %163 : vector<2x8x8xf32>
    %cst_65 = arith.constant dense<0xFF800000> : vector<2x8xf32>
    %165 = vector.multi_reduction <maximumf>, %164, %cst_65 [2] : vector<2x8x8xf32> to vector<2x8xf32>
    %166 = vector.shape_cast %165 : vector<2x8xf32> to vector<2x8x1xf32>
    %167 = vector.broadcast %166 : vector<2x8x1xf32> to vector<2x8x8xf32>
    %168 = arith.subf %164, %167 : vector<2x8x8xf32>
    %169 = math.exp %168 : vector<2x8x8xf32>
    %cst_66 = arith.constant dense<0.000000e+00> : vector<2x8xf32>
    %170 = vector.multi_reduction <add>, %169, %cst_66 [2] : vector<2x8x8xf32> to vector<2x8xf32>
    %171 = vector.shape_cast %170 : vector<2x8xf32> to vector<2x8x1xf32>
    %172 = tpu.reciprocal %171 {approx = true} : vector<2x8x1xf32> -> vector<2x8x1xf32>
    %173 = vector.broadcast %172 : vector<2x8x1xf32> to vector<2x8x8xf32>
    %174 = arith.mulf %169, %173 : vector<2x8x8xf32>
    %175 = arith.truncf %174 : vector<2x8x8xf32> to vector<2x8x8xbf16>
    "tpu.trace_start"() <{level = 10 : i32, message = "hqk,hkd->hqd"}> : () -> ()
    %cst_67 = arith.constant dense<0.000000e+00> : vector<2x8x16xf32>
    %176 = tpu.matmul %175, %160, %cst_67 {dimension_numbers = #tpu.dot_dimension_numbers<[2], [1], [1], [2], [0, 0, 0, 1, 1, 2], [0], [0]>} : vector<2x8x8xbf16>, vector<2x8x16xbf16>, vector<2x8x16xf32> -> vector<2x8x16xf32>
    "tpu.trace_stop"() : () -> ()
    %177 = vector.extract_strided_slice %176 {offsets = [0, 0, 0], sizes = [1, 8, 16], strides = [1, 1, 1]} : vector<2x8x16xf32> to vector<1x8x16xf32>
    %178 = vector.shape_cast %177 : vector<1x8x16xf32> to vector<8x16xf32>
    %179 = vector.extract_strided_slice %176 {offsets = [1, 0, 0], sizes = [1, 8, 16], strides = [1, 1, 1]} : vector<2x8x16xf32> to vector<1x8x16xf32>
    %180 = vector.shape_cast %179 : vector<1x8x16xf32> to vector<8x16xf32>
    %181 = tpu.concatenate %178, %180 in 1 : vector<8x16xf32>, vector<8x16xf32> -> vector<8x32xf32>
    %182 = arith.truncf %181 : vector<8x32xf32> to vector<8x32xbf16>
    %c1_68 = arith.constant 1 : index
    %c0_69 = arith.constant 0 : index
    %c0_70 = arith.constant 0 : index
    %183 = vector.load %arg4[%c1_68, %c0_69, %c0_70] : memref<2x32x32xbf16, #tpu.memory_space<vmem>>, vector<1x32x32xbf16>
    %184 = vector.shape_cast %183 : vector<1x32x32xbf16> to vector<32x32xbf16>
    %cst_71 = arith.constant dense<0.000000e+00> : vector<8x32xf32>
    %185 = tpu.matmul %182, %184, %cst_71 {dimension_numbers = #tpu.dot_dimension_numbers<[1], [0], [0], [1], [0, 0, 1, 1], [], []>} : vector<8x32xbf16>, vector<32x32xbf16>, vector<8x32xf32> -> vector<8x32xf32>
    %c1_72 = arith.constant 1 : index
    %c0_73 = arith.constant 0 : index
    %c0_74 = arith.constant 0 : index
    %186 = vector.load %arg5[%c1_72, %c0_73, %c0_74] : memref<2x1x32xf32, #tpu.memory_space<vmem>>, vector<1x1x32xf32>
    %187 = vector.shape_cast %186 : vector<1x1x32xf32> to vector<1x32xf32>
    %188 = vector.broadcast %187 : vector<1x32xf32> to vector<8x32xf32>
    %189 = arith.addf %185, %188 : vector<8x32xf32>
    %190 = arith.addf %134, %189 : vector<8x32xf32>
    %c1_75 = arith.constant 1 : index
    %c0_76 = arith.constant 0 : index
    %c0_77 = arith.constant 0 : index
    %191 = vector.load %arg6[%c1_75, %c0_76, %c0_77] : memref<2x1x32xf32, #tpu.memory_space<vmem>>, vector<1x1x32xf32>
    %192 = vector.shape_cast %191 : vector<1x1x32xf32> to vector<1x32xf32>
    %c1_78 = arith.constant 1 : index
    %c0_79 = arith.constant 0 : index
    %c0_80 = arith.constant 0 : index
    %193 = vector.load %arg7[%c1_78, %c0_79, %c0_80] : memref<2x1x32xf32, #tpu.memory_space<vmem>>, vector<1x1x32xf32>
    %194 = vector.shape_cast %193 : vector<1x1x32xf32> to vector<1x32xf32>
    %cst_81 = arith.constant dense<0.000000e+00> : vector<8xf32>
    %195 = vector.multi_reduction <add>, %190, %cst_81 [1] : vector<8x32xf32> to vector<8xf32>
    %196 = vector.shape_cast %195 : vector<8xf32> to vector<8x1xf32>
    %cst_82 = arith.constant 3.200000e+01 : f32
    %197 = vector.broadcast %cst_82 : f32 to vector<8x1xf32>
    %198 = arith.divf %196, %197 : vector<8x1xf32>
    %199 = vector.broadcast %198 : vector<8x1xf32> to vector<8x32xf32>
    %200 = arith.subf %190, %199 : vector<8x32xf32>
    %201 = arith.mulf %200, %200 : vector<8x32xf32>
    %cst_83 = arith.constant dense<0.000000e+00> : vector<8xf32>
    %202 = vector.multi_reduction <add>, %201, %cst_83 [1] : vector<8x32xf32> to vector<8xf32>
    %203 = vector.shape_cast %202 : vector<8xf32> to vector<8x1xf32>
    %cst_84 = arith.constant 3.200000e+01 : f32
    %204 = vector.broadcast %cst_84 : f32 to vector<8x1xf32>
    %205 = arith.divf %203, %204 : vector<8x1xf32>
    %206 = vector.broadcast %198 : vector<8x1xf32> to vector<8x32xf32>
    %207 = arith.subf %190, %206 : vector<8x32xf32>
    %cst_85 = arith.constant 9.99999974E-6 : f32
    %208 = vector.broadcast %cst_85 : f32 to vector<8x1xf32>
    %209 = arith.addf %205, %208 : vector<8x1xf32>
    %210 = math.rsqrt %209 : vector<8x1xf32>
    %211 = vector.broadcast %210 : vector<8x1xf32> to vector<8x32xf32>
    %212 = arith.mulf %207, %211 : vector<8x32xf32>
    %213 = vector.broadcast %192 : vector<1x32xf32> to vector<8x32xf32>
    %214 = arith.mulf %212, %213 : vector<8x32xf32>
    %215 = vector.broadcast %194 : vector<1x32xf32> to vector<8x32xf32>
    %216 = arith.addf %214, %215 : vector<8x32xf32>
    %217 = arith.truncf %216 : vector<8x32xf32> to vector<8x32xbf16>
    %c1_86 = arith.constant 1 : index
    %c0_87 = arith.constant 0 : index
    %c0_88 = arith.constant 0 : index
    %218 = vector.load %arg8[%c1_86, %c0_87, %c0_88] : memref<2x32x64xbf16, #tpu.memory_space<vmem>>, vector<1x32x64xbf16>
    %219 = vector.shape_cast %218 : vector<1x32x64xbf16> to vector<32x64xbf16>
    %cst_89 = arith.constant dense<0.000000e+00> : vector<8x64xf32>
    %220 = tpu.matmul %217, %219, %cst_89 {dimension_numbers = #tpu.dot_dimension_numbers<[1], [0], [0], [1], [0, 0, 1, 1], [], []>} : vector<8x32xbf16>, vector<32x64xbf16>, vector<8x64xf32> -> vector<8x64xf32>
    %c1_90 = arith.constant 1 : index
    %c0_91 = arith.constant 0 : index
    %c0_92 = arith.constant 0 : index
    %221 = vector.load %arg9[%c1_90, %c0_91, %c0_92] : memref<2x1x64xf32, #tpu.memory_space<vmem>>, vector<1x1x64xf32>
    %222 = vector.shape_cast %221 : vector<1x1x64xf32> to vector<1x64xf32>
    %223 = vector.broadcast %222 : vector<1x64xf32> to vector<8x64xf32>
    %224 = arith.addf %220, %223 : vector<8x64xf32>
    %cst_93 = arith.constant 0.000000e+00 : f32
    %225 = vector.broadcast %cst_93 : f32 to vector<8x64xf32>
    %226 = arith.maximumf %224, %225 : vector<8x64xf32>
    %227 = arith.truncf %226 : vector<8x64xf32> to vector<8x64xbf16>
    %c1_94 = arith.constant 1 : index
    %c0_95 = arith.constant 0 : index
    %c0_96 = arith.constant 0 : index
    %228 = vector.load %arg10[%c1_94, %c0_95, %c0_96] : memref<2x64x32xbf16, #tpu.memory_space<vmem>>, vector<1x64x32xbf16>
    %229 = vector.shape_cast %228 : vector<1x64x32xbf16> to vector<64x32xbf16>
    %cst_97 = arith.constant dense<0.000000e+00> : vector<8x32xf32>
    %230 = tpu.matmul %227, %229, %cst_97 {dimension_numbers = #tpu.dot_dimension_numbers<[1], [0], [0], [1], [0, 0, 1, 1], [], []>} : vector<8x64xbf16>, vector<64x32xbf16>, vector<8x32xf32> -> vector<8x32xf32>
    %c1_98 = arith.constant 1 : index
    %c0_99 = arith.constant 0 : index
    %c0_100 = arith.constant 0 : index
    %231 = vector.load %arg11[%c1_98, %c0_99, %c0_100] : memref<2x1x32xf32, #tpu.memory_space<vmem>>, vector<1x1x32xf32>
    %232 = vector.shape_cast %231 : vector<1x1x32xf32> to vector<1x32xf32>
    %233 = vector.broadcast %232 : vector<1x32xf32> to vector<8x32xf32>
    %234 = arith.addf %230, %233 : vector<8x32xf32>
    %235 = arith.addf %216, %234 : vector<8x32xf32>
    %c1_101 = arith.constant 1 : index
    %c0_102 = arith.constant 0 : index
    %c0_103 = arith.constant 0 : index
    %236 = vector.load %arg12[%c1_101, %c0_102, %c0_103] : memref<2x1x32xf32, #tpu.memory_space<vmem>>, vector<1x1x32xf32>
    %237 = vector.shape_cast %236 : vector<1x1x32xf32> to vector<1x32xf32>
    %c1_104 = arith.constant 1 : index
    %c0_105 = arith.constant 0 : index
    %c0_106 = arith.constant 0 : index
    %238 = vector.load %arg13[%c1_104, %c0_105, %c0_106] : memref<2x1x32xf32, #tpu.memory_space<vmem>>, vector<1x1x32xf32>
    %239 = vector.shape_cast %238 : vector<1x1x32xf32> to vector<1x32xf32>
    %cst_107 = arith.constant dense<0.000000e+00> : vector<8xf32>
    %240 = vector.multi_reduction <add>, %235, %cst_107 [1] : vector<8x32xf32> to vector<8xf32>
    %241 = vector.shape_cast %240 : vector<8xf32> to vector<8x1xf32>
    %cst_108 = arith.constant 3.200000e+01 : f32
    %242 = vector.broadcast %cst_108 : f32 to vector<8x1xf32>
    %243 = arith.divf %241, %242 : vector<8x1xf32>
    %244 = vector.broadcast %243 : vector<8x1xf32> to vector<8x32xf32>
    %245 = arith.subf %235, %244 : vector<8x32xf32>
    %246 = arith.mulf %245, %245 : vector<8x32xf32>
    %cst_109 = arith.constant dense<0.000000e+00> : vector<8xf32>
    %247 = vector.multi_reduction <add>, %246, %cst_109 [1] : vector<8x32xf32> to vector<8xf32>
    %248 = vector.shape_cast %247 : vector<8xf32> to vector<8x1xf32>
    %cst_110 = arith.constant 3.200000e+01 : f32
    %249 = vector.broadcast %cst_110 : f32 to vector<8x1xf32>
    %250 = arith.divf %248, %249 : vector<8x1xf32>
    %251 = vector.broadcast %243 : vector<8x1xf32> to vector<8x32xf32>
    %252 = arith.subf %235, %251 : vector<8x32xf32>
    %cst_111 = arith.constant 9.99999974E-6 : f32
    %253 = vector.broadcast %cst_111 : f32 to vector<8x1xf32>
    %254 = arith.addf %250, %253 : vector<8x1xf32>
    %255 = math.rsqrt %254 : vector<8x1xf32>
    %256 = vector.broadcast %255 : vector<8x1xf32> to vector<8x32xf32>
    %257 = arith.mulf %252, %256 : vector<8x32xf32>
    %258 = vector.broadcast %237 : vector<1x32xf32> to vector<8x32xf32>
    %259 = arith.mulf %257, %258 : vector<8x32xf32>
    %260 = vector.broadcast %239 : vector<1x32xf32> to vector<8x32xf32>
    %261 = arith.addf %259, %260 : vector<8x32xf32>
    %262 = arith.truncf %261 : vector<8x32xf32> to vector<8x32xbf16>
    %c0_112 = arith.constant 0 : index
    %c0_113 = arith.constant 0 : index
    %263 = vector.load %arg14[%c0_112, %c0_113] : memref<32x128xbf16, #tpu.memory_space<vmem>>, vector<32x128xbf16>
    %cst_114 = arith.constant dense<0.000000e+00> : vector<8x128xf32>
    %264 = tpu.matmul %262, %263, %cst_114 {dimension_numbers = #tpu.dot_dimension_numbers<[1], [0], [0], [1], [0, 0, 1, 1], [], []>} : vector<8x32xbf16>, vector<32x128xbf16>, vector<8x128xf32> -> vector<8x128xf32>
    %c0_115 = arith.constant 0 : index
    %c0_116 = arith.constant 0 : index
    %c0_117 = arith.constant 0 : index
    %265 = vector.load %arg15[%c0_115, %c0_116, %c0_117] : memref<1x8x128xf32, #tpu.memory_space<vmem>>, vector<1x8x128xf32>
    %266 = vector.shape_cast %265 : vector<1x8x128xf32> to vector<8x128xf32>
    %267 = vector.shape_cast %264 : vector<8x128xf32> to vector<1x8x128xf32>
    tpu.vector_store %arg15[%c0_115, %c0_116, %c0_117], %267 {strides = array<i32>} : memref<1x8x128xf32, #tpu.memory_space<vmem>>, vector<1x8x128xf32>,
    return
  }
  func.func @transform_0(%arg0: i32) -> (i32, i32, i32) {
    %c0_i32 = arith.constant 0 : i32
    %c0_i32_0 = arith.constant 0 : i32
    %c0_i32_1 = arith.constant 0 : i32
    return %arg0, %c0_i32, %c0_i32_0 : i32, i32, i32
  }
  func.func @transform_1(%arg0: i32) -> (i32, i32, i32) {
    %c0_i32 = arith.constant 0 : i32
    %c0_i32_0 = arith.constant 0 : i32
    %c0_i32_1 = arith.constant 0 : i32
    %c0_i32_2 = arith.constant 0 : i32
    return %c0_i32, %c0_i32_0, %c0_i32_1 : i32, i32, i32
  }
  func.func @transform_2(%arg0: i32) -> (i32, i32, i32) {
    %c0_i32 = arith.constant 0 : i32
    %c0_i32_0 = arith.constant 0 : i32
    %c0_i32_1 = arith.constant 0 : i32
    %c0_i32_2 = arith.constant 0 : i32
    return %c0_i32, %c0_i32_0, %c0_i32_1 : i32, i32, i32
  }
  func.func @transform_3(%arg0: i32) -> (i32, i32, i32) {
    %c0_i32 = arith.constant 0 : i32
    %c0_i32_0 = arith.constant 0 : i32
    %c0_i32_1 = arith.constant 0 : i32
    %c0_i32_2 = arith.constant 0 : i32
    return %c0_i32, %c0_i32_0, %c0_i32_1 : i32, i32, i32
  }
  func.func @transform_4(%arg0: i32) -> (i32, i32, i32) {
    %c0_i32 = arith.constant 0 : i32
    %c0_i32_0 = arith.constant 0 : i32
    %c0_i32_1 = arith.constant 0 : i32
    %c0_i32_2 = arith.constant 0 : i32
    return %c0_i32, %c0_i32_0, %c0_i32_1 : i32, i32, i32
  }
  func.func @transform_5(%arg0: i32) -> (i32, i32, i32) {
    %c0_i32 = arith.constant 0 : i32
    %c0_i32_0 = arith.constant 0 : i32
    %c0_i32_1 = arith.constant 0 : i32
    %c0_i32_2 = arith.constant 0 : i32
    return %c0_i32, %c0_i32_0, %c0_i32_1 : i32, i32, i32
  }
  func.func @transform_6(%arg0: i32) -> (i32, i32, i32) {
    %c0_i32 = arith.constant 0 : i32
    %c0_i32_0 = arith.constant 0 : i32
    %c0_i32_1 = arith.constant 0 : i32
    %c0_i32_2 = arith.constant 0 : i32
    return %c0_i32, %c0_i32_0, %c0_i32_1 : i32, i32, i32
  }
  func.func @transform_7(%arg0: i32) -> (i32, i32, i32) {
    %c0_i32 = arith.constant 0 : i32
    %c0_i32_0 = arith.constant 0 : i32
    %c0_i32_1 = arith.constant 0 : i32
    %c0_i32_2 = arith.constant 0 : i32
    return %c0_i32, %c0_i32_0, %c0_i32_1 : i32, i32, i32
  }
  func.func @transform_8(%arg0: i32) -> (i32, i32, i32) {
    %c0_i32 = arith.constant 0 : i32
    %c0_i32_0 = arith.constant 0 : i32
    %c0_i32_1 = arith.constant 0 : i32
    %c0_i32_2 = arith.constant 0 : i32
    return %c0_i32, %c0_i32_0, %c0_i32_1 : i32, i32, i32
  }
  func.func @transform_9(%arg0: i32) -> (i32, i32, i32) {
    %c0_i32 = arith.constant 0 : i32
    %c0_i32_0 = arith.constant 0 : i32
    %c0_i32_1 = arith.constant 0 : i32
    %c0_i32_2 = arith.constant 0 : i32
    return %c0_i32, %c0_i32_0, %c0_i32_1 : i32, i32, i32
  }
  func.func @transform_10(%arg0: i32) -> (i32, i32, i32) {
    %c0_i32 = arith.constant 0 : i32
    %c0_i32_0 = arith.constant 0 : i32
    %c0_i32_1 = arith.constant 0 : i32
    %c0_i32_2 = arith.constant 0 : i32
    return %c0_i32, %c0_i32_0, %c0_i32_1 : i32, i32, i32
  }
  func.func @transform_11(%arg0: i32) -> (i32, i32, i32) {
    %c0_i32 = arith.constant 0 : i32
    %c0_i32_0 = arith.constant 0 : i32
    %c0_i32_1 = arith.constant 0 : i32
    %c0_i32_2 = arith.constant 0 : i32
    return %c0_i32, %c0_i32_0, %c0_i32_1 : i32, i32, i32
  }
  func.func @transform_12(%arg0: i32) -> (i32, i32, i32) {
    %c0_i32 = arith.constant 0 : i32
    %c0_i32_0 = arith.constant 0 : i32
    %c0_i32_1 = arith.constant 0 : i32
    %c0_i32_2 = arith.constant 0 : i32
    return %c0_i32, %c0_i32_0, %c0_i32_1 : i32, i32, i32
  }
  func.func @transform_13(%arg0: i32) -> (i32, i32) {
    %c0_i32 = arith.constant 0 : i32
    %c0_i32_0 = arith.constant 0 : i32
    %c0_i32_1 = arith.constant 0 : i32
    return %c0_i32, %c0_i32_0 : i32, i32
  }
  func.func @transform_14(%arg0: i32) -> (i32, i32, i32) {
    %c0_i32 = arith.constant 0 : i32
    %c0_i32_0 = arith.constant 0 : i32
    %c0_i32_1 = arith.constant 0 : i32
    return %arg0, %c0_i32, %c0_i32_0 : i32, i32, i32
  }
}

</mosaic_0001>

<llo_original>
// kernel: tpu_custom_call.1
$region0: #{tpu_custom_call.1}
  #allocation0 [shape = 'u32[]', space=smem, size = 0x4, offset = 0x4, fixed_abs, tag = 'smem constant byte address 0x4 - core index']
  #allocation1 [shape = 'u32[144,128]{1,0:T(1,128)}', space=vmem, size = 0x12000, scoped, tag = 'internal scratch']
  %s0 = inlined_call_operand.hbm [shape: f32[2,8,32], index: 0, kind: input, shape index: {}]
  %s1 = inlined_call_operand.vmem [shape: bf16[2,32,96], index: 1, kind: input, shape index: {}]
  %s2 = inlined_call_operand.hbm [shape: f32[2,1,96], index: 2, kind: input, shape index: {}]
  %s3 = inlined_call_operand.vmem [shape: bf16[2,32,32], index: 3, kind: input, shape index: {}]
  %s4 = inlined_call_operand.hbm [shape: f32[2,1,32], index: 4, kind: input, shape index: {}]
  %s5 = inlined_call_operand.hbm [shape: f32[2,1,32], index: 5, kind: input, shape index: {}]
  %s6 = inlined_call_operand.hbm [shape: f32[2,1,32], index: 6, kind: input, shape index: {}]
  %s7 = inlined_call_operand.vmem [shape: bf16[2,32,64], index: 7, kind: input, shape index: {}]
  %s8 = inlined_call_operand.hbm [shape: f32[2,1,64], index: 8, kind: input, shape index: {}]
  %s9 = inlined_call_operand.vmem [shape: bf16[2,64,32], index: 9, kind: input, shape index: {}]
  %s10 = inlined_call_operand.hbm [shape: f32[2,1,32], index: 10, kind: input, shape index: {}]
  %s11 = inlined_call_operand.hbm [shape: f32[2,1,32], index: 11, kind: input, shape index: {}]
  %s12 = inlined_call_operand.hbm [shape: f32[2,1,32], index: 12, kind: input, shape index: {}]
  %s13 = inlined_call_operand.vmem [shape: bf16[32,128], index: 13, kind: input, shape index: {}]
  %s14 = inlined_call_operand.hbm [shape: f32[2,8,128], index: 14, kind: output, shape index: {}]
  %s15 = sld [smem:[#allocation0]]
  $region125: #{tpu_custom_call.1} parent=0
    _
  %s17 = ssub.s32 1, %s15
  %s18 = scalar_select 0, %s17, %s15
  $region1: #{tpu_custom_call.1} parent=0
    #allocation2 [shape = 'u8[8192]{0}', space=vmem, size = 0x2000, scoped, tag = 'input window, operand 0']
    #allocation3 [shape = 's32[2]{0}', space=sflag, size = 0x8, scoped, tag = 'scoped memory for tpu_custom_call.1']
    #allocation4 [shape = 's32[2]{0}', space=sflag, size = 0x8, scoped, tag = 'scoped memory for tpu_custom_call.1']
    #allocation5 [shape = 'u8[1024]{0}', space=vmem, size = 0x400, scoped, tag = 'input window, operand 2, single buffered']
    #allocation6 [shape = 's32[1]{0}', space=sflag, size = 0x4, scoped, tag = 'scoped memory for tpu_custom_call.1']
    #allocation7 [shape = 'u8[1024]{0}', space=vmem, size = 0x400, scoped, tag = 'input window, operand 4, single buffered']
    #allocation8 [shape = 'u8[1024]{0}', space=vmem, size = 0x400, scoped, tag = 'input window, operand 5, single buffered']
    #allocation9 [shape = 's32[1]{0}', space=sflag, size = 0x4, scoped, tag = 'scoped memory for tpu_custom_call.1']
    #allocation10 [shape = 'u8[1024]{0}', space=vmem, size = 0x400, scoped, tag = 'input window, operand 6, single buffered']
    #allocation11 [shape = 'u8[1024]{0}', space=vmem, size = 0x400, scoped, tag = 'input window, operand 8, single buffered']
    #allocation12 [shape = 's32[1]{0}', space=sflag, size = 0x4, scoped, tag = 'scoped memory for tpu_custom_call.1']
    #allocation13 [shape = 'u8[1024]{0}', space=vmem, size = 0x400, scoped, tag = 'input window, operand 10, single buffered']
    #allocation14 [shape = 'u8[1024]{0}', space=vmem, size = 0x400, scoped, tag = 'input window, operand 11, single buffered']
    #allocation15 [shape = 's32[1]{0}', space=sflag, size = 0x4, scoped, tag = 'scoped memory for tpu_custom_call.1']
    #allocation16 [shape = 'u8[1024]{0}', space=vmem, size = 0x400, scoped, tag = 'input window, operand 12, single buffered']
    #allocation17 [shape = 'u8[8192]{0}', space=vmem, size = 0x2000, scoped, tag = 'output window, operand 0']
    %19 = vsyncpa [#allocation3], 0
    %s20 = scalar_lea.sflag [#allocation3], 1
    %21 = vsyncpa %s20, 0
    %22 = vsyncpa [#allocation6], 0
    %23 = vsyncpa [#allocation9], 0
    %24 = vsyncpa [#allocation12], 0
    %25 = vsyncpa [#allocation15], 0
    %26 = vsyncpa [#allocation4], 0
    %s27 = scalar_lea.sflag [#allocation4], 1
    %28 = vsyncpa %s27, 0
    loop: start=0, step=1, limit=4
    $region2: #{tpu_custom_call.1} parent=1 // loop_pre_header
      _
    $region3: #{tpu_custom_call.1} parent=1 // loop_header
      %s30 = sphi 0, %s34
      %p31 = scmp.ge.s32.totalorder %s30, 4
      %s40 = sphi 0, %s42
      %s43 = sphi 0, %s40
      %s44 = sphi 0, %s43
      %s60 = sphi 0, %s44
      %s64 = sphi 0, %s64
      %s66 = sphi 0, %s64
      %s67 = sphi 0, %s66
      %s81 = sphi 0, %s67
      %s85 = sphi 0, %s85
      %s87 = sphi 0, %s85
      %s88 = sphi 0, %s87
      %s102 = sphi 0, %s88
      %s106 = sphi 0, %s106
      %s108 = sphi 0, %s106
      %s109 = sphi 0, %s108
      %s123 = sphi 0, %s109
      %s127 = sphi 0, %s127
      %s129 = sphi 0, %s127
      %s130 = sphi 0, %s129
      %s144 = sphi 0, %s130
      %s148 = sphi 0, %s148
      %s150 = sphi 0, %s148
      %s151 = sphi 0, %s150
      %s165 = sphi 0, %s151
      %s169 = sphi 0, %s169
      %s171 = sphi 0, %s169
      %s172 = sphi 0, %s171
      %s186 = sphi 0, %s172
      %s190 = sphi 0, %s190
      %s192 = sphi 0, %s190
      %s193 = sphi 0, %s192
      %s207 = sphi 0, %s193
      %s211 = sphi 0, %s211
      %s213 = sphi 0, %s211
      %s214 = sphi 0, %s213
      %s228 = sphi 0, %s214
      %s232 = sphi 0, %s232
      %s234 = sphi 0, %s232
      %s235 = sphi 0, %s234
      %s249 = sphi 0, %s235
      %s253 = sphi 0, %s253
      %s255 = sphi 0, %s253
      %s256 = sphi 0, %s255
      %s270 = sphi 0, %s256
      %s274 = sphi 0, %s274
      %s276 = sphi 0, %s274
      %s277 = sphi 0, %s276
      %s291 = sphi 0, %s277
      %s295 = sphi 0, %s295
      %s297 = sphi 0, %s295
      %s298 = sphi 0, %s297
      %s312 = sphi 0, %s298
      %s316 = sphi 0, %s316
      %s318 = sphi 0, %s316
      %s319 = sphi 0, %s318
      %s333 = sphi 0, %s319
      %s339 = sphi 0, %s341
      %s342 = sphi 0, %s339
      %s343 = sphi 0, %s342
      %s359 = sphi 0, %s343
    $region4: #{tpu_custom_call.1} parent=1 // loop_header_branch
      %33 = sbr.rel (%p31) target = $region8
    $region5: #{tpu_custom_call.1} parent=1 // loop_body
      %s35 = ssub.s32 %s30, 1
      %s36 = ssub.s32 %s30, 2
      %s37 = sadd.s32 %s30, 1
      %s38 = ssub.s32 %s30, %s37
      %p39 = scmp.eq.s32.totalorder %s38, 0
      %s41 = sadd.s32 %s40, 1
      %s42 = scalar_select %p39, %s40, %s41
      %p45 = pneg %p39
      %p46 = scmp.eq.s32.totalorder %s30, 1
      %p47 = por %p45, %p46
      %p48 = scmp.ne.s32.totalorder %s40, %s43
      %p49 = scmp.eq.s32.totalorder %s30, 0
      %p50 = por %p48, %p49
      %p51 = scmp.ne.s32.totalorder %s40, %s43
      %p52 = scmp.eq.s32.totalorder %s35, 1
      %p53 = por %p51, %p52
      %p54 = scmp.ne.s32.totalorder %s43, %s44
      %p55 = scmp.eq.s32.totalorder %s35, 0
      %p56 = por %p54, %p55
      %p57 = scmp.ne.s32.totalorder %s43, %s44
      %p58 = scmp.eq.s32.totalorder %s36, 1
      %p59 = por %p57, %p58
      %p61 = scmp.ne.s32.totalorder %s44, %s60
      %p62 = scmp.eq.s32.totalorder %s36, 0
      %p63 = por %p61, %p62
      %s65 = sadd.s32 %s64, 1
      %p68 = scmp.eq.s32.totalorder %s30, 1
      %p69 = scmp.ne.s32.totalorder %s64, %s66
      %p70 = scmp.eq.s32.totalorder %s30, 0
      %p71 = por %p69, %p70
      %p72 = scmp.ne.s32.totalorder %s64, %s66
      %p73 = scmp.eq.s32.totalorder %s35, 1
      %p74 = por %p72, %p73
      %p75 = scmp.ne.s32.totalorder %s66, %s67
      %p76 = scmp.eq.s32.totalorder %s35, 0
      %p77 = por %p75, %p76
      %p78 = scmp.ne.s32.totalorder %s66, %s67
      %p79 = scmp.eq.s32.totalorder %s36, 1
      %p80 = por %p78, %p79
      %p82 = scmp.ne.s32.totalorder %s67, %s81
      %p83 = scmp.eq.s32.totalorder %s36, 0
      %p84 = por %p82, %p83
      %s86 = sadd.s32 %s85, 1
      %p89 = scmp.eq.s32.totalorder %s30, 1
      %p90 = scmp.ne.s32.totalorder %s85, %s87
      %p91 = scmp.eq.s32.totalorder %s30, 0
      %p92 = por %p90, %p91
      %p93 = scmp.ne.s32.totalorder %s85, %s87
      %p94 = scmp.eq.s32.totalorder %s35, 1
      %p95 = por %p93, %p94
      %p96 = scmp.ne.s32.totalorder %s87, %s88
      %p97 = scmp.eq.s32.totalorder %s35, 0
      %p98 = por %p96, %p97
      %p99 = scmp.ne.s32.totalorder %s87, %s88
      %p100 = scmp.eq.s32.totalorder %s36, 1
      %p101 = por %p99, %p100
      %p103 = scmp.ne.s32.totalorder %s88, %s102
      %p104 = scmp.eq.s32.totalorder %s36, 0
      %p105 = por %p103, %p104
      %s107 = sadd.s32 %s106, 1
      %p110 = scmp.eq.s32.totalorder %s30, 1
      %p111 = scmp.ne.s32.totalorder %s106, %s108
      %p112 = scmp.eq.s32.totalorder %s30, 0
      %p113 = por %p111, %p112
      %p114 = scmp.ne.s32.totalorder %s106, %s108
      %p115 = scmp.eq.s32.totalorder %s35, 1
      %p116 = por %p114, %p115
      %p117 = scmp.ne.s32.totalorder %s108, %s109
      %p118 = scmp.eq.s32.totalorder %s35, 0
      %p119 = por %p117, %p118
      %p120 = scmp.ne.s32.totalorder %s108, %s109
      %p121 = scmp.eq.s32.totalorder %s36, 1
      %p122 = por %p120, %p121
      %p124 = scmp.ne.s32.totalorder %s109, %s123
      %p125 = scmp.eq.s32.totalorder %s36, 0
      %p126 = por %p124, %p125
      %s128 = sadd.s32 %s127, 1
      %p131 = scmp.eq.s32.totalorder %s30, 1
      %p132 = scmp.ne.s32.totalorder %s127, %s129
      %p133 = scmp.eq.s32.totalorder %s30, 0
      %p134 = por %p132, %p133
      %p135 = scmp.ne.s32.totalorder %s127, %s129
      %p136 = scmp.eq.s32.totalorder %s35, 1
      %p137 = por %p135, %p136
      %p138 = scmp.ne.s32.totalorder %s129, %s130
      %p139 = scmp.eq.s32.totalorder %s35, 0
      %p140 = por %p138, %p139
      %p141 = scmp.ne.s32.totalorder %s129, %s130
      %p142 = scmp.eq.s32.totalorder %s36, 1
      %p143 = por %p141, %p142
      %p145 = scmp.ne.s32.totalorder %s130, %s144
      %p146 = scmp.eq.s32.totalorder %s36, 0
      %p147 = por %p145, %p146
      %s149 = sadd.s32 %s148, 1
      %p152 = scmp.eq.s32.totalorder %s30, 1
      %p153 = scmp.ne.s32.totalorder %s148, %s150
      %p154 = scmp.eq.s32.totalorder %s30, 0
      %p155 = por %p153, %p154
      %p156 = scmp.ne.s32.totalorder %s148, %s150
      %p157 = scmp.eq.s32.totalorder %s35, 1
      %p158 = por %p156, %p157
      %p159 = scmp.ne.s32.totalorder %s150, %s151
      %p160 = scmp.eq.s32.totalorder %s35, 0
      %p161 = por %p159, %p160
      %p162 = scmp.ne.s32.totalorder %s150, %s151
      %p163 = scmp.eq.s32.totalorder %s36, 1
      %p164 = por %p162, %p163
      %p166 = scmp.ne.s32.totalorder %s151, %s165
      %p167 = scmp.eq.s32.totalorder %s36, 0
      %p168 = por %p166, %p167
      %s170 = sadd.s32 %s169, 1
      %p173 = scmp.eq.s32.totalorder %s30, 1
      %p174 = scmp.ne.s32.totalorder %s169, %s171
      %p175 = scmp.eq.s32.totalorder %s30, 0
      %p176 = por %p174, %p175
      %p177 = scmp.ne.s32.totalorder %s169, %s171
      %p178 = scmp.eq.s32.totalorder %s35, 1
      %p179 = por %p177, %p178
      %p180 = scmp.ne.s32.totalorder %s171, %s172
      %p181 = scmp.eq.s32.totalorder %s35, 0
      %p182 = por %p180, %p181
      %p183 = scmp.ne.s32.totalorder %s171, %s172
      %p184 = scmp.eq.s32.totalorder %s36, 1
      %p185 = por %p183, %p184
      %p187 = scmp.ne.s32.totalorder %s172, %s186
      %p188 = scmp.eq.s32.totalorder %s36, 0
      %p189 = por %p187, %p188
      %s191 = sadd.s32 %s190, 1
      %p194 = scmp.eq.s32.totalorder %s30, 1
      %p195 = scmp.ne.s32.totalorder %s190, %s192
      %p196 = scmp.eq.s32.totalorder %s30, 0
      %p197 = por %p195, %p196
      %p198 = scmp.ne.s32.totalorder %s190, %s192
      %p199 = scmp.eq.s32.totalorder %s35, 1
      %p200 = por %p198, %p199
      %p201 = scmp.ne.s32.totalorder %s192, %s193
      %p202 = scmp.eq.s32.totalorder %s35, 0
      %p203 = por %p201, %p202
      %p204 = scmp.ne.s32.totalorder %s192, %s193
      %p205 = scmp.eq.s32.totalorder %s36, 1
      %p206 = por %p204, %p205
      %p208 = scmp.ne.s32.totalorder %s193, %s207
      %p209 = scmp.eq.s32.totalorder %s36, 0
      %p210 = por %p208, %p209
      %s212 = sadd.s32 %s211, 1
      %p215 = scmp.eq.s32.totalorder %s30, 1
      %p216 = scmp.ne.s32.totalorder %s211, %s213
      %p217 = scmp.eq.s32.totalorder %s30, 0
      %p218 = por %p216, %p217
      %p219 = scmp.ne.s32.totalorder %s211, %s213
      %p220 = scmp.eq.s32.totalorder %s35, 1
      %p221 = por %p219, %p220
      %p222 = scmp.ne.s32.totalorder %s213, %s214
      %p223 = scmp.eq.s32.totalorder %s35, 0
      %p224 = por %p222, %p223
      %p225 = scmp.ne.s32.totalorder %s213, %s214
      %p226 = scmp.eq.s32.totalorder %s36, 1
      %p227 = por %p225, %p226
      %p229 = scmp.ne.s32.totalorder %s214, %s228
      %p230 = scmp.eq.s32.totalorder %s36, 0
      %p231 = por %p229, %p230
      %s233 = sadd.s32 %s232, 1
      %p236 = scmp.eq.s32.totalorder %s30, 1
      %p237 = scmp.ne.s32.totalorder %s232, %s234
      %p238 = scmp.eq.s32.totalorder %s30, 0
      %p239 = por %p237, %p238
      %p240 = scmp.ne.s32.totalorder %s232, %s234
      %p241 = scmp.eq.s32.totalorder %s35, 1
      %p242 = por %p240, %p241
      %p243 = scmp.ne.s32.totalorder %s234, %s235
      %p244 = scmp.eq.s32.totalorder %s35, 0
      %p245 = por %p243, %p244
      %p246 = scmp.ne.s32.totalorder %s234, %s235
      %p247 = scmp.eq.s32.totalorder %s36, 1
      %p248 = por %p246, %p247
      %p250 = scmp.ne.s32.totalorder %s235, %s249
      %p251 = scmp.eq.s32.totalorder %s36, 0
      %p252 = por %p250, %p251
      %s254 = sadd.s32 %s253, 1
      %p257 = scmp.eq.s32.totalorder %s30, 1
      %p258 = scmp.ne.s32.totalorder %s253, %s255
      %p259 = scmp.eq.s32.totalorder %s30, 0
      %p260 = por %p258, %p259
      %p261 = scmp.ne.s32.totalorder %s253, %s255
      %p262 = scmp.eq.s32.totalorder %s35, 1
      %p263 = por %p261, %p262
      %p264 = scmp.ne.s32.totalorder %s255, %s256
      %p265 = scmp.eq.s32.totalorder %s35, 0
      %p266 = por %p264, %p265
      %p267 = scmp.ne.s32.totalorder %s255, %s256
      %p268 = scmp.eq.s32.totalorder %s36, 1
      %p269 = por %p267, %p268
      %p271 = scmp.ne.s32.totalorder %s256, %s270
      %p272 = scmp.eq.s32.totalorder %s36, 0
      %p273 = por %p271, %p272
      %s275 = sadd.s32 %s274, 1
      %p278 = scmp.eq.s32.totalorder %s30, 1
      %p279 = scmp.ne.s32.totalorder %s274, %s276
      %p280 = scmp.eq.s32.totalorder %s30, 0
      %p281 = por %p279, %p280
      %p282 = scmp.ne.s32.totalorder %s274, %s276
      %p283 = scmp.eq.s32.totalorder %s35, 1
      %p284 = por %p282, %p283
      %p285 = scmp.ne.s32.totalorder %s276, %s277
      %p286 = scmp.eq.s32.totalorder %s35, 0
      %p287 = por %p285, %p286
      %p288 = scmp.ne.s32.totalorder %s276, %s277
      %p289 = scmp.eq.s32.totalorder %s36, 1
      %p290 = por %p288, %p289
      %p292 = scmp.ne.s32.totalorder %s277, %s291
      %p293 = scmp.eq.s32.totalorder %s36, 0
      %p294 = por %p292, %p293
      %s296 = sadd.s32 %s295, 1
      %p299 = scmp.eq.s32.totalorder %s30, 1
      %p300 = scmp.ne.s32.totalorder %s295, %s297
      %p301 = scmp.eq.s32.totalorder %s30, 0
      %p302 = por %p300, %p301
      %p303 = scmp.ne.s32.totalorder %s295, %s297
      %p304 = scmp.eq.s32.totalorder %s35, 1
      %p305 = por %p303, %p304
      %p306 = scmp.ne.s32.totalorder %s297, %s298
      %p307 = scmp.eq.s32.totalorder %s35, 0
      %p308 = por %p306, %p307
      %p309 = scmp.ne.s32.totalorder %s297, %s298
      %p310 = scmp.eq.s32.totalorder %s36, 1
      %p311 = por %p309, %p310
      %p313 = scmp.ne.s32.totalorder %s298, %s312
      %p314 = scmp.eq.s32.totalorder %s36, 0
      %p315 = por %p313, %p314
      %s317 = sadd.s32 %s316, 1
      %p320 = scmp.eq.s32.totalorder %s30, 1
      %p321 = scmp.ne.s32.totalorder %s316, %s318
      %p322 = scmp.eq.s32.totalorder %s30, 0
      %p323 = por %p321, %p322
      %p324 = scmp.ne.s32.totalorder %s316, %s318
      %p325 = scmp.eq.s32.totalorder %s35, 1
      %p326 = por %p324, %p325
      %p327 = scmp.ne.s32.totalorder %s318, %s319
      %p328 = scmp.eq.s32.totalorder %s35, 0
      %p329 = por %p327, %p328
      %p330 = scmp.ne.s32.totalorder %s318, %s319
      %p331 = scmp.eq.s32.totalorder %s36, 1
      %p332 = por %p330, %p331
      %p334 = scmp.ne.s32.totalorder %s319, %s333
      %p335 = scmp.eq.s32.totalorder %s36, 0
      %p336 = por %p334, %p335
      %s337 = ssub.s32 %s30, %s37
      %p338 = scmp.eq.s32.totalorder %s337, 0
      %s340 = sadd.s32 %s339, 1
      %s341 = scalar_select %p338, %s339, %s340
      %p344 = pneg %p338
      %p345 = scmp.eq.s32.totalorder %s30, 1
      %p346 = por %p344, %p345
      %p347 = scmp.ne.s32.totalorder %s339, %s342
      %p348 = scmp.eq.s32.totalorder %s30, 0
      %p349 = por %p347, %p348
      %p350 = scmp.ne.s32.totalorder %s339, %s342
      %p351 = scmp.eq.s32.totalorder %s35, 1
      %p352 = por %p350, %p351
      %p353 = scmp.ne.s32.totalorder %s342, %s343
      %p354 = scmp.eq.s32.totalorder %s35, 0
      %p355 = por %p353, %p354
      %p356 = scmp.ne.s32.totalorder %s342, %s343
      %p357 = scmp.eq.s32.totalorder %s36, 1
      %p358 = por %p356, %p357
      %p360 = scmp.ne.s32.totalorder %s343, %s359
      %p361 = scmp.eq.s32.totalorder %s36, 0
      %p362 = por %p360, %p361
      %p363 = scmp.le.s32.totalorder 1, %s30
      %p364 = scmp.lt.s32.totalorder %s30, 3
      %p365 = pnand %p363, %p364
      %p366 = pneg %p365
      // Predicated region
      $region9: #{tpu_custom_call.1} parent=5 // pred_check
        _
      $region10: #{tpu_custom_call.1} parent=5 // pred_check_branch
        %368 = sbr.rel (%p365) target = $region12
      $region11: #{tpu_custom_call.1} parent=5 // pred_region
        %s369 = ssub.s32 %s30, 1
        // Predicated region
        $region13: #{tpu_custom_call.1} parent=11 // pred_check
          %p370 = pneg %p77
        $region14: #{tpu_custom_call.1} parent=11 // pred_check_branch
          %372 = sbr.rel (%p370) target = $region16
        $region15: #{tpu_custom_call.1} parent=11 // pred_region
          _
        $region16: #{tpu_custom_call.1} parent=11 // pred_fallthru
          _
        // Predicated region
        $region17: #{tpu_custom_call.1} parent=11 // pred_check
          %p373 = pneg %p98
        $region18: #{tpu_custom_call.1} parent=11 // pred_check_branch
          %375 = sbr.rel (%p373) target = $region20
        $region19: #{tpu_custom_call.1} parent=11 // pred_region
          %s377 = ssub.s32 32, 32
          %378 = vsyncadd [#allocation6], %s377
          %s379 = sshll.u32 [#allocation5], 4
          %s380 = int_to_ptr.vmem [resolvable:$true] %s379
          %385 = dma.hbm_to_vmem [thread:$0]  %s2, 32, %s380, [#allocation6], 16, 16, 1
        $region20: #{tpu_custom_call.1} parent=11 // pred_fallthru
          _
        // Predicated region
        $region21: #{tpu_custom_call.1} parent=11 // pred_check
          %p386 = pneg %p119
        $region22: #{tpu_custom_call.1} parent=11 // pred_check_branch
          %388 = sbr.rel (%p386) target = $region24
        $region23: #{tpu_custom_call.1} parent=11 // pred_region
          _
        $region24: #{tpu_custom_call.1} parent=11 // pred_fallthru
          _
        // Predicated region
        $region25: #{tpu_custom_call.1} parent=11 // pred_check
          %p389 = pneg %p140
        $region26: #{tpu_custom_call.1} parent=11 // pred_check_branch
          %391 = sbr.rel (%p389) target = $region28
        $region27: #{tpu_custom_call.1} parent=11 // pred_region
          %s393 = ssub.s32 32, 32
          %394 = vsyncadd [#allocation6], %s393
          %s395 = sshll.u32 [#allocation7], 4
          %s396 = int_to_ptr.vmem [resolvable:$true] %s395
          %401 = dma.hbm_to_vmem [thread:$0]  %s4, 32, %s396, [#allocation6], 16, 16, 1
        $region28: #{tpu_custom_call.1} parent=11 // pred_fallthru
          _
        // Predicated region
        $region29: #{tpu_custom_call.1} parent=11 // pred_check
          %p402 = pneg %p161
        $region30: #{tpu_custom_call.1} parent=11 // pred_check_branch
          %404 = sbr.rel (%p402) target = $region32
        $region31: #{tpu_custom_call.1} parent=11 // pred_region
          %s406 = ssub.s32 32, 32
          %407 = vsyncadd [#allocation9], %s406
          %s408 = sshll.u32 [#allocation8], 4
          %s409 = int_to_ptr.vmem [resolvable:$true] %s408
          %414 = dma.hbm_to_vmem [thread:$0]  %s5, 32, %s409, [#allocation9], 16, 16, 1
        $region32: #{tpu_custom_call.1} parent=11 // pred_fallthru
          _
        // Predicated region
        $region33: #{tpu_custom_call.1} parent=11 // pred_check
          %p415 = pneg %p182
        $region34: #{tpu_custom_call.1} parent=11 // pred_check_branch
          %417 = sbr.rel (%p415) target = $region36
        $region35: #{tpu_custom_call.1} parent=11 // pred_region
          %s419 = ssub.s32 32, 32
          %420 = vsyncadd [#allocation9], %s419
          %s421 = sshll.u32 [#allocation10], 4
          %s422 = int_to_ptr.vmem [resolvable:$true] %s421
          %427 = dma.hbm_to_vmem [thread:$0]  %s6, 32, %s422, [#allocation9], 16, 16, 1
        $region36: #{tpu_custom_call.1} parent=11 // pred_fallthru
          _
        // Predicated region
        $region37: #{tpu_custom_call.1} parent=11 // pred_check
          %p428 = pneg %p203
        $region38: #{tpu_custom_call.1} parent=11 // pred_check_branch
          %430 = sbr.rel (%p428) target = $region40
        $region39: #{tpu_custom_call.1} parent=11 // pred_region
          _
        $region40: #{tpu_custom_call.1} parent=11 // pred_fallthru
          _
        // Predicated region
        $region41: #{tpu_custom_call.1} parent=11 // pred_check
          %p431 = pneg %p224
        $region42: #{tpu_custom_call.1} parent=11 // pred_check_branch
          %433 = sbr.rel (%p431) target = $region44
        $region43: #{tpu_custom_call.1} parent=11 // pred_region
          %s435 = ssub.s32 32, 32
          %436 = vsyncadd [#allocation12], %s435
          %s437 = sshll.u32 [#allocation11], 4
          %s438 = int_to_ptr.vmem [resolvable:$true] %s437
          %443 = dma.hbm_to_vmem [thread:$0]  %s8, 32, %s438, [#allocation12], 16, 16, 1
        $region44: #{tpu_custom_call.1} parent=11 // pred_fallthru
          _
        // Predicated region
        $region45: #{tpu_custom_call.1} parent=11 // pred_check
          %p444 = pneg %p245
        $region46: #{tpu_custom_call.1} parent=11 // pred_check_branch
          %446 = sbr.rel (%p444) target = $region48
        $region47: #{tpu_custom_call.1} parent=11 // pred_region
          _
        $region48: #{tpu_custom_call.1} parent=11 // pred_fallthru
          _
        // Predicated region
        $region49: #{tpu_custom_call.1} parent=11 // pred_check
          %p447 = pneg %p266
        $region50: #{tpu_custom_call.1} parent=11 // pred_check_branch
          %449 = sbr.rel (%p447) target = $region52
        $region51: #{tpu_custom_call.1} parent=11 // pred_region
          %s451 = ssub.s32 32, 32
          %452 = vsyncadd [#allocation12], %s451
          %s453 = sshll.u32 [#allocation13], 4
          %s454 = int_to_ptr.vmem [resolvable:$true] %s453
          %459 = dma.hbm_to_vmem [thread:$0]  %s10, 32, %s454, [#allocation12], 16, 16, 1
        $region52: #{tpu_custom_call.1} parent=11 // pred_fallthru
          _
        // Predicated region
        $region53: #{tpu_custom_call.1} parent=11 // pred_check
          %p460 = pneg %p287
        $region54: #{tpu_custom_call.1} parent=11 // pred_check_branch
          %462 = sbr.rel (%p460) target = $region56
        $region55: #{tpu_custom_call.1} parent=11 // pred_region
          %s464 = ssub.s32 32, 32
          %465 = vsyncadd [#allocation15], %s464
          %s466 = sshll.u32 [#allocation14], 4
          %s467 = int_to_ptr.vmem [resolvable:$true] %s466
          %472 = dma.hbm_to_vmem [thread:$0]  %s11, 32, %s467, [#allocation15], 16, 16, 1
        $region56: #{tpu_custom_call.1} parent=11 // pred_fallthru
          _
        // Predicated region
        $region57: #{tpu_custom_call.1} parent=11 // pred_check
          %p473 = pneg %p308
        $region58: #{tpu_custom_call.1} parent=11 // pred_check_branch
          %475 = sbr.rel (%p473) target = $region60
        $region59: #{tpu_custom_call.1} parent=11 // pred_region
          %s477 = ssub.s32 32, 32
          %478 = vsyncadd [#allocation15], %s477
          %s479 = sshll.u32 [#allocation16], 4
          %s480 = int_to_ptr.vmem [resolvable:$true] %s479
          %485 = dma.hbm_to_vmem [thread:$0]  %s12, 32, %s480, [#allocation15], 16, 16, 1
        $region60: #{tpu_custom_call.1} parent=11 // pred_fallthru
          _
        // Predicated region
        $region61: #{tpu_custom_call.1} parent=11 // pred_check
          %p486 = pneg %p329
        $region62: #{tpu_custom_call.1} parent=11 // pred_check_branch
          %488 = sbr.rel (%p486) target = $region64
        $region63: #{tpu_custom_call.1} parent=11 // pred_region
          _
        $region64: #{tpu_custom_call.1} parent=11 // pred_fallthru
          _
      $region12: #{tpu_custom_call.1} parent=5 // pred_fallthru
        _
      %p489 = scmp.lt.s32.totalorder %s30, 2
      // Predicated region
      $region65: #{tpu_custom_call.1} parent=5 // pred_check
        %p490 = pneg %p489
      $region66: #{tpu_custom_call.1} parent=5 // pred_check_branch
        %492 = sbr.rel (%p490) target = $region68
      $region67: #{tpu_custom_call.1} parent=5 // pred_region
        // Predicated region
        $region69: #{tpu_custom_call.1} parent=67 // pred_check
          %p493 = pneg %p50
        $region70: #{tpu_custom_call.1} parent=67 // pred_check_branch
          %495 = sbr.rel (%p493) target = $region72
        $region71: #{tpu_custom_call.1} parent=67 // pred_region
          %s496 = sand.u32 %s40, 1
          %s497 = scalar_lea.sflag [#allocation3], %s496
          %s498 = sand.u32 %s40, 1
          %s499 = smul.addr %s498, 8
          %s500 = scalar_lea.vmem [#allocation2], %s499
          %s502 = ssub.s32 128, 128
          %503 = vsyncadd %s497, %s502
          %s504 = smul.addr %s30, 128
          %s505 = scalar_lea.hbm %s0, %s504
          %s507 = sshll.u32 %s500, 4
          %s508 = int_to_ptr.vmem [resolvable:$true] %s507
          %510 = dma.hbm_to_vmem [thread:$0]  %s505, 128, %s508, %s497
        $region72: #{tpu_custom_call.1} parent=67 // pred_fallthru
          _
      $region68: #{tpu_custom_call.1} parent=5 // pred_fallthru
        _
      %p511 = scmp.le.s32.totalorder 1, %s30
      %p512 = scmp.lt.s32.totalorder %s30, 3
      %p513 = pnand %p511, %p512
      %p514 = pneg %p513
      // Predicated region
      $region73: #{tpu_custom_call.1} parent=5 // pred_check
        _
      $region74: #{tpu_custom_call.1} parent=5 // pred_check_branch
        %516 = sbr.rel (%p513) target = $region76
      $region75: #{tpu_custom_call.1} parent=5 // pred_region
        %s517 = ssub.s32 %s30, 1
        %s518 = sand.u32 %s43, 1
        %s519 = scalar_lea.sflag [#allocation3], %s518
        %s520 = sand.u32 %s43, 1
        %s521 = smul.addr %s520, 8
        %s522 = scalar_lea.vmem [#allocation2], %s521
        // Predicated region
        $region77: #{tpu_custom_call.1} parent=75 // pred_check
          %p523 = pneg %p56
        $region78: #{tpu_custom_call.1} parent=75 // pred_check_branch
          %525 = sbr.rel (%p523) target = $region80
        $region79: #{tpu_custom_call.1} parent=75 // pred_region
          %526 = dma.done %s519, 128
        $region80: #{tpu_custom_call.1} parent=75 // pred_fallthru
          _
        // Predicated region
        $region81: #{tpu_custom_call.1} parent=75 // pred_check
          %p527 = pneg %p98
        $region82: #{tpu_custom_call.1} parent=75 // pred_check_branch
          %529 = sbr.rel (%p527) target = $region84
        $region83: #{tpu_custom_call.1} parent=75 // pred_region
          %530 = dma.done [#allocation6], 32
        $region84: #{tpu_custom_call.1} parent=75 // pred_fallthru
          _
        // Predicated region
        $region85: #{tpu_custom_call.1} parent=75 // pred_check
          %p531 = pneg %p140
        $region86: #{tpu_custom_call.1} parent=75 // pred_check_branch
          %533 = sbr.rel (%p531) target = $region88
        $region87: #{tpu_custom_call.1} parent=75 // pred_region
          %534 = dma.done [#allocation6], 32
        $region88: #{tpu_custom_call.1} parent=75 // pred_fallthru
          _
        // Predicated region
        $region89: #{tpu_custom_call.1} parent=75 // pred_check
          %p535 = pneg %p161
        $region90: #{tpu_custom_call.1} parent=75 // pred_check_branch
          %537 = sbr.rel (%p535) target = $region92
        $region91: #{tpu_custom_call.1} parent=75 // pred_region
          %538 = dma.done [#allocation9], 32
        $region92: #{tpu_custom_call.1} parent=75 // pred_fallthru
          _
        // Predicated region
        $region93: #{tpu_custom_call.1} parent=75 // pred_check
          %p539 = pneg %p182
        $region94: #{tpu_custom_call.1} parent=75 // pred_check_branch
          %541 = sbr.rel (%p539) target = $region96
        $region95: #{tpu_custom_call.1} parent=75 // pred_region
          %542 = dma.done [#allocation9], 32
        $region96: #{tpu_custom_call.1} parent=75 // pred_fallthru
          _
        // Predicated region
        $region97: #{tpu_custom_call.1} parent=75 // pred_check
          %p543 = pneg %p224
        $region98: #{tpu_custom_call.1} parent=75 // pred_check_branch
          %545 = sbr.rel (%p543) target = $region100
        $region99: #{tpu_custom_call.1} parent=75 // pred_region
          %546 = dma.done [#allocation12], 32
        $region100: #{tpu_custom_call.1} parent=75 // pred_fallthru
          _
        // Predicated region
        $region101: #{tpu_custom_call.1} parent=75 // pred_check
          %p547 = pneg %p266
        $region102: #{tpu_custom_call.1} parent=75 // pred_check_branch
          %549 = sbr.rel (%p547) target = $region104
        $region103: #{tpu_custom_call.1} parent=75 // pred_region
          %550 = dma.done [#allocation12], 32
        $region104: #{tpu_custom_call.1} parent=75 // pred_fallthru
          _
        // Predicated region
        $region105: #{tpu_custom_call.1} parent=75 // pred_check
          %p551 = pneg %p287
        $region106: #{tpu_custom_call.1} parent=75 // pred_check_branch
          %553 = sbr.rel (%p551) target = $region108
        $region107: #{tpu_custom_call.1} parent=75 // pred_region
          %554 = dma.done [#allocation15], 32
        $region108: #{tpu_custom_call.1} parent=75 // pred_fallthru
          _
        // Predicated region
        $region109: #{tpu_custom_call.1} parent=75 // pred_check
          %p555 = pneg %p308
        $region110: #{tpu_custom_call.1} parent=75 // pred_check_branch
          %557 = sbr.rel (%p555) target = $region112
        $region111: #{tpu_custom_call.1} parent=75 // pred_region
          %558 = dma.done [#allocation15], 32
        $region112: #{tpu_custom_call.1} parent=75 // pred_fallthru
          _
        %s559 = sand.u32 %s43, 1
        %s560 = scalar_lea.sflag [#allocation3], %s559
        %s561 = sand.u32 %s43, 1
        %s562 = smul.addr %s561, 8
        %s563 = scalar_lea.vmem [#allocation2], %s562
        %p564 = pneg %p56
        %p565 = pneg %p53
        %p566 = pneg %p77
        %p567 = pneg %p74
        %p568 = pneg %p98
        %p569 = pneg %p95
        %p570 = pneg %p119
        %p571 = pneg %p116
        %p572 = pneg %p140
        %p573 = pneg %p137
        %p574 = pneg %p161
        %p575 = pneg %p158
        %p576 = pneg %p182
        %p577 = pneg %p179
        %p578 = pneg %p203
        %p579 = pneg %p200
        %p580 = pneg %p224
        %p581 = pneg %p221
        %p582 = pneg %p245
        %p583 = pneg %p242
        %p584 = pneg %p266
        %p585 = pneg %p263
        %p586 = pneg %p287
        %p587 = pneg %p284
        %p588 = pneg %p308
        %p589 = pneg %p305
        %p590 = pneg %p329
        %p591 = pneg %p326
        %p592 = pneg %p355
        %p593 = pneg %p352
        %s594 = sand.u32 %s342, 1
        %s595 = scalar_lea.sflag [#allocation4], %s594
        %s596 = sand.u32 %s342, 1
        %s597 = smul.addr %s596, 8
        %s598 = scalar_lea.vmem [#allocation17], %s597
        %v600 = vld [vmem:[%s522] sm:$0xff]
        %v601 = vlaneseq
        %v602 = vshrl.u32 %v601, 7
        %v603 = vlaneseq
        %v604 = vand.u32 %v603, 127
        %vm605 = vcmp.gt.s32.totalorder %v604, %v602
        %v606 = vsel %vm605, -1e+30, 0.0
        %v607 = vpack.c.bf16 %v600, %v600
        %v608 = vld [vmem:[%s1] sm:$0xf]
        %v609 = vld [vmem:[%s1 + $0x4] sm:$0xf]
        %v610 = vld [vmem:[%s1 + $0x8] sm:$0xf]
        %v611 = vld [vmem:[%s1 + $0xc] sm:$0xf]
        %v612 = vld [vmem:[#allocation5] sm:$0x1]
        %v614 = vlaneseq
        %v615 = vshrl.u32 %v614, 7
        %v616 = vsub.s32 0, %v615
        %v617 = vrot.slane %v612, %v616
        %v623 = vunpack.c.l.b16 %v608
        %v624 = vunpack.c.l.b16 %v609
        %v625 = vunpack.c.l.b16 %v610
        %v626 = vunpack.c.l.b16 %v611
        %v627 = vpack.c.b16 %v624, %v623
        %v628 = vpack.c.b16 %v626, %v625
        %vm631 = vcmask 261120
        %v633 = vsel %vm631, %v607, 0
        %635 = vmatprep.subr.bf16.mxu0 0
        %636 = vmatpush1.bf16.msra.mxu0 %v627
        %637 = vmatprep.subr.bf16.mxu0 0
        %638 = vmatpush1.bf16.msra.mxu0 %v628
        %639 = vmatprep.subr.bf16.mxu0 0
        %640 = vmatpush1.bf16.msra.mxu0 0
        %641 = vmatprep.subr.bf16.mxu0 0
        %642 = vmatpush1.bf16.msra.mxu0 0
        %643 = vmatprep.subr.bf16.mxu0 0
        %644 = vmatpush1.bf16.msra.mxu0 0
        %645 = vmatprep.subr.bf16.mxu0 0
        %646 = vmatpush1.bf16.msra.mxu0 0
        %647 = vmatprep.subr.bf16.mxu0 0
        %648 = vmatpush1.bf16.msra.mxu0 0
        %649 = vmatprep.subr.bf16.mxu0 0
        %650 = vmatpush1.bf16.msra.mxu0 0
        %651 = vmatprep.subr.bf16.mxu0 0
        %652 = vmatpush1.bf16.msra.mxu0 0
        %653 = vmatprep.subr.bf16.mxu0 0
        %654 = vmatpush1.bf16.msra.mxu0 0
        %655 = vmatprep.subr.bf16.mxu0 0
        %656 = vmatpush1.bf16.msra.mxu0 0
        %657 = vmatprep.subr.bf16.mxu0 0
        %658 = vmatpush1.bf16.msra.mxu0 0
        %659 = vmatprep.subr.bf16.mxu0 0
        %660 = vmatpush1.bf16.msra.mxu0 0
        %661 = vmatprep.subr.bf16.mxu0 0
        %662 = vmatpush1.bf16.msra.mxu0 0
        %663 = vmatprep.subr.bf16.mxu0 0
        %664 = vmatpush1.bf16.msra.mxu0 0
        %665 = vmatprep.subr.bf16.mxu0 0
        %666 = vmatpush1.bf16.msra.mxu0 0
        %667 = vmatprep.mubr.bf16.mxu0 0
        %668 = vmatmul.mubr.bf16.gmra.mrb[0].mxu0 %v633
        %v669 = vpop.f32.mrb[0].mxu0
        %v670 = vadd.f32 %v617, %v669
        %v671 = vpop.f32.mrb[0].mxu0
        %v672 = vpop.f32.mrb[0].mxu0
        %v673 = vpop.f32.mrb[0].mxu0
        %674 = vdwg.mxu0
        %676 = vrot.lane.b32.xlu0 %v670, 112
        %v677 = vpop.permute.xlu0 %676
        %v679 = vpack.c.bf16 %v670, %v670
        %v680 = vpack.c.bf16 %v677, %v677
        %682 = vrot.lane.b32.xlu0 %v679, 96
        %v683 = vpop.permute.xlu0 %682
        %vm684 = vcmask 130048
        %v686 = vsel %vm684, %v679, 0
        %v689 = vsel %vm684, %v683, 0
        %691 = vmatprep.subr.bf16.mxu0 0
        %692 = vmatpush1.bf16.xpose.msra.mxu0 %v689
        %693 = vmatprep.subr.bf16.mxu0 0
        %694 = vmatpush1.bf16.xpose.msra.mxu0 0
        %695 = vmatprep.subr.bf16.mxu0 0
        %696 = vmatpush1.bf16.xpose.msra.mxu0 0
        %697 = vmatprep.subr.bf16.mxu0 0
        %698 = vmatpush1.bf16.xpose.msra.mxu0 0
        %699 = vmatprep.subr.bf16.mxu0 0
        %700 = vmatpush1.bf16.xpose.msra.mxu0 0
        %701 = vmatprep.subr.bf16.mxu0 0
        %702 = vmatpush1.bf16.xpose.msra.mxu0 0
        %703 = vmatprep.subr.bf16.mxu0 0
        %704 = vmatpush1.bf16.xpose.msra.mxu0 0
        %705 = vmatprep.subr.bf16.mxu0 0
        %706 = vmatpush1.bf16.xpose.msra.mxu0 0
        %707 = vmatprep.subr.bf16.mxu0 0
        %708 = vmatpush1.bf16.xpose.msra.mxu0 0
        %709 = vmatprep.subr.bf16.mxu0 0
        %710 = vmatpush1.bf16.xpose.msra.mxu0 0
        %711 = vmatprep.subr.bf16.mxu0 0
        %712 = vmatpush1.bf16.xpose.msra.mxu0 0
        %713 = vmatprep.subr.bf16.mxu0 0
        %714 = vmatpush1.bf16.xpose.msra.mxu0 0
        %715 = vmatprep.subr.bf16.mxu0 0
        %716 = vmatpush1.bf16.xpose.msra.mxu0 0
        %717 = vmatprep.subr.bf16.mxu0 0
        %718 = vmatpush1.bf16.xpose.msra.mxu0 0
        %719 = vmatprep.subr.bf16.mxu0 0
        %720 = vmatpush1.bf16.xpose.msra.mxu0 0
        %721 = vmatprep.subr.bf16.mxu0 0
        %722 = vmatpush1.bf16.xpose.msra.mxu0 0
        %723 = vmatprep.mubr.bf16.mxu0 0
        %724 = vmatmul.mubr.bf16.gmra.mrb[0].mxu0 %v686
        %v725 = vpop.f32.mrb[0].mxu0
        %v726 = vadd.f32 %v606, %v725
        %v727 = vpop.f32.mrb[0].mxu0
        %v728 = vpop.f32.mrb[0].mxu0
        %v729 = vpop.f32.mrb[0].mxu0
        %730 = vdwg.mxu0
        %732 = vrot.lane.b32.xlu0 %v680, 96
        %v733 = vpop.permute.xlu0 %732
        %v735 = vsel %vm684, %v680, 0
        %v738 = vsel %vm684, %v733, 0
        %740 = vmatprep.subr.bf16.mxu0 0
        %741 = vmatpush1.bf16.xpose.msra.mxu0 %v738
        %742 = vmatprep.subr.bf16.mxu0 0
        %743 = vmatpush1.bf16.xpose.msra.mxu0 0
        %744 = vmatprep.subr.bf16.mxu0 0
        %745 = vmatpush1.bf16.xpose.msra.mxu0 0
        %746 = vmatprep.subr.bf16.mxu0 0
        %747 = vmatpush1.bf16.xpose.msra.mxu0 0
        %748 = vmatprep.subr.bf16.mxu0 0
        %749 = vmatpush1.bf16.xpose.msra.mxu0 0
        %750 = vmatprep.subr.bf16.mxu0 0
        %751 = vmatpush1.bf16.xpose.msra.mxu0 0
        %752 = vmatprep.subr.bf16.mxu0 0
        %753 = vmatpush1.bf16.xpose.msra.mxu0 0
        %754 = vmatprep.subr.bf16.mxu0 0
        %755 = vmatpush1.bf16.xpose.msra.mxu0 0
        %756 = vmatprep.subr.bf16.mxu0 0
        %757 = vmatpush1.bf16.xpose.msra.mxu0 0
        %758 = vmatprep.subr.bf16.mxu0 0
        %759 = vmatpush1.bf16.xpose.msra.mxu0 0
        %760 = vmatprep.subr.bf16.mxu0 0
        %761 = vmatpush1.bf16.xpose.msra.mxu0 0
        %762 = vmatprep.subr.bf16.mxu0 0
        %763 = vmatpush1.bf16.xpose.msra.mxu0 0
        %764 = vmatprep.subr.bf16.mxu0 0
        %765 = vmatpush1.bf16.xpose.msra.mxu0 0
        %766 = vmatprep.subr.bf16.mxu0 0
        %767 = vmatpush1.bf16.xpose.msra.mxu0 0
        %768 = vmatprep.subr.bf16.mxu0 0
        %769 = vmatpush1.bf16.xpose.msra.mxu0 0
        %770 = vmatprep.subr.bf16.mxu0 0
        %771 = vmatpush1.bf16.xpose.msra.mxu0 0
        %772 = vmatprep.mubr.bf16.mxu0 0
        %773 = vmatmul.mubr.bf16.gmra.mrb[0].mxu0 %v735
        %v774 = vpop.f32.mrb[0].mxu0
        %v775 = vadd.f32 %v606, %v774
        %v776 = vpop.f32.mrb[0].mxu0
        %v777 = vpop.f32.mrb[0].mxu0
        %v778 = vpop.f32.mrb[0].mxu0
        %779 = vdwg.mxu0
        %vm780 = vcmask 64512
        %v781 = vsel %vm780, %v726, -inf
        %782 = vmax.xlane.f32.xlu0 %v781
        %v783 = vpop.xlane.xlu0 %782
        %v784 = vsel %vm780, %v775, -inf
        %785 = vmax.xlane.f32.xlu0 %v784
        %v786 = vpop.xlane.xlu0 %785
        %v787 = vsub.f32 %v726, %v783
        %v788 = vsub.f32 %v775, %v786
        %v789 = vmul.f32 %v787, 1.442695
        %v790 = vpow.pop %v789
        %v791 = vmul.f32 %v788, 1.442695
        %v792 = vpow.pop %v791
        %v793 = vsel %vm780, %v790, 0.0
        %794 = vadd.xlane.f32.xlu0 %v793
        %v795 = vpop.xlane.xlu0 %794
        %v796 = vsel %vm780, %v792, 0.0
        %797 = vadd.xlane.f32.xlu0 %v796
        %v798 = vpop.xlane.xlu0 %797
        %v799 = vrcp.pop %v795
        %v800 = vrcp.pop %v798
        %v801 = vmul.f32 %v790, %v799
        %v802 = vmul.f32 %v792, %v800
        %v803 = vpack.c.bf16 %v801, %v801
        %v804 = vpack.c.bf16 %v802, %v802
        %805 = vrot.lane.b32.xlu0 %v679, 64
        %v806 = vpop.permute.xlu0 %805
        %v808 = vsel %vm780, %v803, 0
        %vm810 = vcmask 1043456
        %v812 = vsel %vm810, %v806, 0
        %814 = vmatprep.subr.bf16.mxu0 0
        %815 = vmatpush1.bf16.msra.mxu0 %v812
        %816 = vmatprep.subr.bf16.mxu0 0
        %817 = vmatpush1.bf16.msra.mxu0 0
        %818 = vmatprep.subr.bf16.mxu0 0
        %819 = vmatpush1.bf16.msra.mxu0 0
        %820 = vmatprep.subr.bf16.mxu0 0
        %821 = vmatpush1.bf16.msra.mxu0 0
        %822 = vmatprep.subr.bf16.mxu0 0
        %823 = vmatpush1.bf16.msra.mxu0 0
        %824 = vmatprep.subr.bf16.mxu0 0
        %825 = vmatpush1.bf16.msra.mxu0 0
        %826 = vmatprep.subr.bf16.mxu0 0
        %827 = vmatpush1.bf16.msra.mxu0 0
        %828 = vmatprep.subr.bf16.mxu0 0
        %829 = vmatpush1.bf16.msra.mxu0 0
        %830 = vmatprep.subr.bf16.mxu0 0
        %831 = vmatpush1.bf16.msra.mxu0 0
        %832 = vmatprep.subr.bf16.mxu0 0
        %833 = vmatpush1.bf16.msra.mxu0 0
        %834 = vmatprep.subr.bf16.mxu0 0
        %835 = vmatpush1.bf16.msra.mxu0 0
        %836 = vmatprep.subr.bf16.mxu0 0
        %837 = vmatpush1.bf16.msra.mxu0 0
        %838 = vmatprep.subr.bf16.mxu0 0
        %839 = vmatpush1.bf16.msra.mxu0 0
        %840 = vmatprep.subr.bf16.mxu0 0
        %841 = vmatpush1.bf16.msra.mxu0 0
        %842 = vmatprep.subr.bf16.mxu0 0
        %843 = vmatpush1.bf16.msra.mxu0 0
        %844 = vmatprep.subr.bf16.mxu0 0
        %845 = vmatpush1.bf16.msra.mxu0 0
        %846 = vmatprep.mubr.bf16.mxu0 0
        %847 = vmatmul.mubr.bf16.gmra.mrb[0].mxu0 %v808
        %v848 = vpop.f32.mrb[0].mxu0
        %v849 = vadd.f32 0.0, %v848
        %v850 = vpop.f32.mrb[0].mxu0
        %v851 = vpop.f32.mrb[0].mxu0
        %v852 = vpop.f32.mrb[0].mxu0
        %853 = vdwg.mxu0
        %854 = vrot.lane.b32.xlu0 %v680, 64
        %v855 = vpop.permute.xlu0 %854
        %v857 = vsel %vm780, %v804, 0
        %v860 = vsel %vm810, %v855, 0
        %862 = vmatprep.subr.bf16.mxu0 0
        %863 = vmatpush1.bf16.msra.mxu0 %v860
        %864 = vmatprep.subr.bf16.mxu0 0
        %865 = vmatpush1.bf16.msra.mxu0 0
        %866 = vmatprep.subr.bf16.mxu0 0
        %867 = vmatpush1.bf16.msra.mxu0 0
        %868 = vmatprep.subr.bf16.mxu0 0
        %869 = vmatpush1.bf16.msra.mxu0 0
        %870 = vmatprep.subr.bf16.mxu0 0
        %871 = vmatpush1.bf16.msra.mxu0 0
        %872 = vmatprep.subr.bf16.mxu0 0
        %873 = vmatpush1.bf16.msra.mxu0 0
        %874 = vmatprep.subr.bf16.mxu0 0
        %875 = vmatpush1.bf16.msra.mxu0 0
        %876 = vmatprep.subr.bf16.mxu0 0
        %877 = vmatpush1.bf16.msra.mxu0 0
        %878 = vmatprep.subr.bf16.mxu0 0
        %879 = vmatpush1.bf16.msra.mxu0 0
        %880 = vmatprep.subr.bf16.mxu0 0
        %881 = vmatpush1.bf16.msra.mxu0 0
        %882 = vmatprep.subr.bf16.mxu0 0
        %883 = vmatpush1.bf16.msra.mxu0 0
        %884 = vmatprep.subr.bf16.mxu0 0
        %885 = vmatpush1.bf16.msra.mxu0 0
        %886 = vmatprep.subr.bf16.mxu0 0
        %887 = vmatpush1.bf16.msra.mxu0 0
        %888 = vmatprep.subr.bf16.mxu0 0
        %889 = vmatpush1.bf16.msra.mxu0 0
        %890 = vmatprep.subr.bf16.mxu0 0
        %891 = vmatpush1.bf16.msra.mxu0 0
        %892 = vmatprep.subr.bf16.mxu0 0
        %893 = vmatpush1.bf16.msra.mxu0 0
        %894 = vmatprep.mubr.bf16.mxu0 0
        %895 = vmatmul.mubr.bf16.gmra.mrb[0].mxu0 %v857
        %v896 = vpop.f32.mrb[0].mxu0
        %v897 = vadd.f32 0.0, %v896
        %v898 = vpop.f32.mrb[0].mxu0
        %v899 = vpop.f32.mrb[0].mxu0
        %v900 = vpop.f32.mrb[0].mxu0
        %901 = vdwg.mxu0
        %903 = vrot.lane.b32.xlu0 %v897, 16
        %v904 = vpop.permute.xlu0 %903
        %v906 = vsel %vm684, %v849, %v904
        %v907 = vpack.c.bf16 %v906, %v906
        %v908 = vld [vmem:[%s3] sm:$0xf]
        %v909 = vld [vmem:[%s3 + $0x4] sm:$0xf]
        %v910 = vld [vmem:[%s3 + $0x8] sm:$0xf]
        %v911 = vld [vmem:[%s3 + $0xc] sm:$0xf]
        %v912 = vld [vmem:[#allocation7] sm:$0x1]
        %v914 = vlaneseq
        %v915 = vshrl.u32 %v914, 7
        %v916 = vsub.s32 0, %v915
        %v917 = vrot.slane %v912, %v916
        %v923 = vunpack.c.l.b16 %v908
        %v924 = vunpack.c.l.b16 %v909
        %v925 = vunpack.c.l.b16 %v910
        %v926 = vunpack.c.l.b16 %v911
        %v927 = vpack.c.b16 %v924, %v923
        %v928 = vpack.c.b16 %v926, %v925
        %v932 = vsel %vm631, %v907, 0
        %934 = vmatprep.subr.bf16.mxu0 0
        %935 = vmatpush1.bf16.msra.mxu0 %v927
        %936 = vmatprep.subr.bf16.mxu0 0
        %937 = vmatpush1.bf16.msra.mxu0 %v928
        %938 = vmatprep.subr.bf16.mxu0 0
        %939 = vmatpush1.bf16.msra.mxu0 0
        %940 = vmatprep.subr.bf16.mxu0 0
        %941 = vmatpush1.bf16.msra.mxu0 0
        %942 = vmatprep.subr.bf16.mxu0 0
        %943 = vmatpush1.bf16.msra.mxu0 0
        %944 = vmatprep.subr.bf16.mxu0 0
        %945 = vmatpush1.bf16.msra.mxu0 0
        %946 = vmatprep.subr.bf16.mxu0 0
        %947 = vmatpush1.bf16.msra.mxu0 0
        %948 = vmatprep.subr.bf16.mxu0 0
        %949 = vmatpush1.bf16.msra.mxu0 0
        %950 = vmatprep.subr.bf16.mxu0 0
        %951 = vmatpush1.bf16.msra.mxu0 0
        %952 = vmatprep.subr.bf16.mxu0 0
        %953 = vmatpush1.bf16.msra.mxu0 0
        %954 = vmatprep.subr.bf16.mxu0 0
        %955 = vmatpush1.bf16.msra.mxu0 0
        %956 = vmatprep.subr.bf16.mxu0 0
        %957 = vmatpush1.bf16.msra.mxu0 0
        %958 = vmatprep.subr.bf16.mxu0 0
        %959 = vmatpush1.bf16.msra.mxu0 0
        %960 = vmatprep.subr.bf16.mxu0 0
        %961 = vmatpush1.bf16.msra.mxu0 0
        %962 = vmatprep.subr.bf16.mxu0 0
        %963 = vmatpush1.bf16.msra.mxu0 0
        %964 = vmatprep.subr.bf16.mxu0 0
        %965 = vmatpush1.bf16.msra.mxu0 0
        %966 = vmatprep.mubr.bf16.mxu0 0
        %967 = vmatmul.mubr.bf16.gmra.mrb[0].mxu0 %v932
        %v968 = vpop.f32.mrb[0].mxu0
        %v969 = vadd.f32 %v917, %v968
        %v970 = vpop.f32.mrb[0].mxu0
        %v971 = vpop.f32.mrb[0].mxu0
        %v972 = vpop.f32.mrb[0].mxu0
        %973 = vdwg.mxu0
        %v974 = vadd.f32 %v600, %v969
        %v975 = vld [vmem:[#allocation8] sm:$0x1]
        %v976 = vld [vmem:[#allocation10] sm:$0x1]
        %v977 = vsel %vm631, %v974, 0.0
        %978 = vadd.xlane.f32.xlu0 %v977
        %v979 = vpop.xlane.xlu0 %978
        %v980 = vrcp.pop 32.0
        %v981 = vmul.f32 %v979, %v980
        %v982 = vsub.f32 %v974, %v981
        %v983 = vmul.f32 %v982, %v982
        %v984 = vsel %vm631, %v983, 0.0
        %985 = vadd.xlane.f32.xlu0 %v984
        %v986 = vpop.xlane.xlu0 %985
        %v987 = vmul.f32 %v986, %v980
        %v988 = vadd.f32 %v987, 1e-05
        %v989 = vrsqrt.pop %v988
        %v990 = vmul.f32 %v982, %v989
        %v992 = vlaneseq
        %v993 = vshrl.u32 %v992, 7
        %v994 = vsub.s32 0, %v993
        %v995 = vrot.slane %v975, %v994
        %v997 = vmul.f32 %v990, %v995
        %v999 = vlaneseq
        %v1000 = vshrl.u32 %v999, 7
        %v1001 = vsub.s32 0, %v1000
        %v1002 = vrot.slane %v976, %v1001
        %v1004 = vadd.f32 %v997, %v1002
        %v1005 = vpack.c.bf16 %v1004, %v1004
        %v1006 = vld [vmem:[%s7] sm:$0xf]
        %v1007 = vld [vmem:[%s7 + $0x4] sm:$0xf]
        %v1008 = vld [vmem:[%s7 + $0x8] sm:$0xf]
        %v1009 = vld [vmem:[%s7 + $0xc] sm:$0xf]
        %v1010 = vld [vmem:[#allocation11] sm:$0x1]
        %v1012 = vlaneseq
        %v1013 = vshrl.u32 %v1012, 7
        %v1014 = vsub.s32 0, %v1013
        %v1015 = vrot.slane %v1010, %v1014
        %v1021 = vunpack.c.l.b16 %v1006
        %v1022 = vunpack.c.l.b16 %v1007
        %v1023 = vunpack.c.l.b16 %v1008
        %v1024 = vunpack.c.l.b16 %v1009
        %v1025 = vpack.c.b16 %v1022, %v1021
        %v1026 = vpack.c.b16 %v1024, %v1023
        %v1030 = vsel %vm631, %v1005, 0
        %1032 = vmatprep.subr.bf16.mxu0 0
        %1033 = vmatpush1.bf16.msra.mxu0 %v1025
        %1034 = vmatprep.subr.bf16.mxu0 0
        %1035 = vmatpush1.bf16.msra.mxu0 %v1026
        %1036 = vmatprep.subr.bf16.mxu0 0
        %1037 = vmatpush1.bf16.msra.mxu0 0
        %1038 = vmatprep.subr.bf16.mxu0 0
        %1039 = vmatpush1.bf16.msra.mxu0 0
        %1040 = vmatprep.subr.bf16.mxu0 0
        %1041 = vmatpush1.bf16.msra.mxu0 0
        %1042 = vmatprep.subr.bf16.mxu0 0
        %1043 = vmatpush1.bf16.msra.mxu0 0
        %1044 = vmatprep.subr.bf16.mxu0 0
        %1045 = vmatpush1.bf16.msra.mxu0 0
        %1046 = vmatprep.subr.bf16.mxu0 0
        %1047 = vmatpush1.bf16.msra.mxu0 0
        %1048 = vmatprep.subr.bf16.mxu0 0
        %1049 = vmatpush1.bf16.msra.mxu0 0
        %1050 = vmatprep.subr.bf16.mxu0 0
        %1051 = vmatpush1.bf16.msra.mxu0 0
        %1052 = vmatprep.subr.bf16.mxu0 0
        %1053 = vmatpush1.bf16.msra.mxu0 0
        %1054 = vmatprep.subr.bf16.mxu0 0
        %1055 = vmatpush1.bf16.msra.mxu0 0
        %1056 = vmatprep.subr.bf16.mxu0 0
        %1057 = vmatpush1.bf16.msra.mxu0 0
        %1058 = vmatprep.subr.bf16.mxu0 0
        %1059 = vmatpush1.bf16.msra.mxu0 0
        %1060 = vmatprep.subr.bf16.mxu0 0
        %1061 = vmatpush1.bf16.msra.mxu0 0
        %1062 = vmatprep.subr.bf16.mxu0 0
        %1063 = vmatpush1.bf16.msra.mxu0 0
        %1064 = vmatprep.mubr.bf16.mxu0 0
        %1065 = vmatmul.mubr.bf16.gmra.mrb[0].mxu0 %v1030
        %v1066 = vpop.f32.mrb[0].mxu0
        %v1067 = vadd.f32 %v1015, %v1066
        %v1068 = vpop.f32.mrb[0].mxu0
        %v1069 = vpop.f32.mrb[0].mxu0
        %v1070 = vpop.f32.mrb[0].mxu0
        %1071 = vdwg.mxu0
        %v1072 = vmax.f32 %v1067, 0.0
        %v1073 = vpack.c.bf16 %v1072, %v1072
        %v1074 = vld [vmem:[%s9] sm:$0xf]
        %v1075 = vld [vmem:[%s9 + $0x4] sm:$0xf]
        %v1076 = vld [vmem:[%s9 + $0x8] sm:$0xf]
        %v1077 = vld [vmem:[%s9 + $0xc] sm:$0xf]
        %v1078 = vld [vmem:[%s9 + $0x10] sm:$0xf]
        %v1079 = vld [vmem:[%s9 + $0x14] sm:$0xf]
        %v1080 = vld [vmem:[%s9 + $0x18] sm:$0xf]
        %v1081 = vld [vmem:[%s9 + $0x1c] sm:$0xf]
        %v1082 = vld [vmem:[#allocation13] sm:$0x1]
        %v1084 = vlaneseq
        %v1085 = vshrl.u32 %v1084, 7
        %v1086 = vsub.s32 0, %v1085
        %v1087 = vrot.slane %v1082, %v1086
        %v1097 = vunpack.c.l.b16 %v1074
        %v1098 = vunpack.c.l.b16 %v1075
        %v1099 = vunpack.c.l.b16 %v1076
        %v1100 = vunpack.c.l.b16 %v1077
        %v1101 = vunpack.c.l.b16 %v1078
        %v1102 = vunpack.c.l.b16 %v1079
        %v1103 = vunpack.c.l.b16 %v1080
        %v1104 = vunpack.c.l.b16 %v1081
        %v1105 = vpack.c.b16 %v1098, %v1097
        %v1106 = vpack.c.b16 %v1100, %v1099
        %v1107 = vpack.c.b16 %v1102, %v1101
        %v1108 = vpack.c.b16 %v1104, %v1103
        %vm1113 = vcmask 523264
        %v1115 = vsel %vm1113, %v1073, 0
        %1117 = vmatprep.subr.bf16.mxu0 0
        %1118 = vmatpush1.bf16.msra.mxu0 %v1105
        %1119 = vmatprep.subr.bf16.mxu0 0
        %1120 = vmatpush1.bf16.msra.mxu0 %v1106
        %1121 = vmatprep.subr.bf16.mxu0 0
        %1122 = vmatpush1.bf16.msra.mxu0 %v1107
        %1123 = vmatprep.subr.bf16.mxu0 0
        %1124 = vmatpush1.bf16.msra.mxu0 %v1108
        %1125 = vmatprep.subr.bf16.mxu0 0
        %1126 = vmatpush1.bf16.msra.mxu0 0
        %1127 = vmatprep.subr.bf16.mxu0 0
        %1128 = vmatpush1.bf16.msra.mxu0 0
        %1129 = vmatprep.subr.bf16.mxu0 0
        %1130 = vmatpush1.bf16.msra.mxu0 0
        %1131 = vmatprep.subr.bf16.mxu0 0
        %1132 = vmatpush1.bf16.msra.mxu0 0
        %1133 = vmatprep.subr.bf16.mxu0 0
        %1134 = vmatpush1.bf16.msra.mxu0 0
        %1135 = vmatprep.subr.bf16.mxu0 0
        %1136 = vmatpush1.bf16.msra.mxu0 0
        %1137 = vmatprep.subr.bf16.mxu0 0
        %1138 = vmatpush1.bf16.msra.mxu0 0
        %1139 = vmatprep.subr.bf16.mxu0 0
        %1140 = vmatpush1.bf16.msra.mxu0 0
        %1141 = vmatprep.subr.bf16.mxu0 0
        %1142 = vmatpush1.bf16.msra.mxu0 0
        %1143 = vmatprep.subr.bf16.mxu0 0
        %1144 = vmatpush1.bf16.msra.mxu0 0
        %1145 = vmatprep.subr.bf16.mxu0 0
        %1146 = vmatpush1.bf16.msra.mxu0 0
        %1147 = vmatprep.subr.bf16.mxu0 0
        %1148 = vmatpush1.bf16.msra.mxu0 0
        %1149 = vmatprep.mubr.bf16.mxu0 0
        %1150 = vmatmul.mubr.bf16.gmra.mrb[0].mxu0 %v1115
        %v1151 = vpop.f32.mrb[0].mxu0
        %v1152 = vadd.f32 %v1087, %v1151
        %v1153 = vpop.f32.mrb[0].mxu0
        %v1154 = vpop.f32.mrb[0].mxu0
        %v1155 = vpop.f32.mrb[0].mxu0
        %1156 = vdwg.mxu0
        %v1157 = vadd.f32 %v1004, %v1152
        %v1158 = vld [vmem:[#allocation14] sm:$0x1]
        %v1159 = vld [vmem:[#allocation16] sm:$0x1]
        %v1160 = vsel %vm631, %v1157, 0.0
        %1161 = vadd.xlane.f32.xlu0 %v1160
        %v1162 = vpop.xlane.xlu0 %1161
        %v1163 = vmul.f32 %v1162, %v980
        %v1164 = vsub.f32 %v1157, %v1163
        %v1165 = vmul.f32 %v1164, %v1164
        %v1166 = vsel %vm631, %v1165, 0.0
        %1167 = vadd.xlane.f32.xlu0 %v1166
        %v1168 = vpop.xlane.xlu0 %1167
        %v1169 = vmul.f32 %v1168, %v980
        %v1170 = vadd.f32 %v1169, 1e-05
        %v1171 = vrsqrt.pop %v1170
        %v1172 = vmul.f32 %v1164, %v1171
        %v1174 = vlaneseq
        %v1175 = vshrl.u32 %v1174, 7
        %v1176 = vsub.s32 0, %v1175
        %v1177 = vrot.slane %v1158, %v1176
        %v1179 = vmul.f32 %v1172, %v1177
        %v1181 = vlaneseq
        %v1182 = vshrl.u32 %v1181, 7
        %v1183 = vsub.s32 0, %v1182
        %v1184 = vrot.slane %v1159, %v1183
        %v1186 = vadd.f32 %v1179, %v1184
        %v1187 = vpack.c.bf16 %v1186, %v1186
        %s1188 = scalar_lea.vmem %s1, 16
        %v1189 = vld [vmem:[%s1188] sm:$0xf]
        %v1190 = vld [vmem:[%s1188 + $0x4] sm:$0xf]
        %v1191 = vld [vmem:[%s1188 + $0x8] sm:$0xf]
        %v1192 = vld [vmem:[%s1188 + $0xc] sm:$0xf]
        %s1193 = scalar_lea.vmem [#allocation5], 1
        %v1194 = vld [vmem:[%s1193] sm:$0x1]
        %v1196 = vlaneseq
        %v1197 = vshrl.u32 %v1196, 7
        %v1198 = vsub.s32 0, %v1197
        %v1199 = vrot.slane %v1194, %v1198
        %v1205 = vunpack.c.l.b16 %v1189
        %v1206 = vunpack.c.l.b16 %v1190
        %v1207 = vunpack.c.l.b16 %v1191
        %v1208 = vunpack.c.l.b16 %v1192
        %v1209 = vpack.c.b16 %v1206, %v1205
        %v1210 = vpack.c.b16 %v1208, %v1207
        %v1214 = vsel %vm631, %v1187, 0
        %1216 = vmatprep.subr.bf16.mxu0 0
        %1217 = vmatpush1.bf16.msra.mxu0 %v1209
        %1218 = vmatprep.subr.bf16.mxu0 0
        %1219 = vmatpush1.bf16.msra.mxu0 %v1210
        %1220 = vmatprep.subr.bf16.mxu0 0
        %1221 = vmatpush1.bf16.msra.mxu0 0
        %1222 = vmatprep.subr.bf16.mxu0 0
        %1223 = vmatpush1.bf16.msra.mxu0 0
        %1224 = vmatprep.subr.bf16.mxu0 0
        %1225 = vmatpush1.bf16.msra.mxu0 0
        %1226 = vmatprep.subr.bf16.mxu0 0
        %1227 = vmatpush1.bf16.msra.mxu0 0
        %1228 = vmatprep.subr.bf16.mxu0 0
        %1229 = vmatpush1.bf16.msra.mxu0 0
        %1230 = vmatprep.subr.bf16.mxu0 0
        %1231 = vmatpush1.bf16.msra.mxu0 0
        %1232 = vmatprep.subr.bf16.mxu0 0
        %1233 = vmatpush1.bf16.msra.mxu0 0
        %1234 = vmatprep.subr.bf16.mxu0 0
        %1235 = vmatpush1.bf16.msra.mxu0 0
        %1236 = vmatprep.subr.bf16.mxu0 0
        %1237 = vmatpush1.bf16.msra.mxu0 0
        %1238 = vmatprep.subr.bf16.mxu0 0
        %1239 = vmatpush1.bf16.msra.mxu0 0
        %1240 = vmatprep.subr.bf16.mxu0 0
        %1241 = vmatpush1.bf16.msra.mxu0 0
        %1242 = vmatprep.subr.bf16.mxu0 0
        %1243 = vmatpush1.bf16.msra.mxu0 0
        %1244 = vmatprep.subr.bf16.mxu0 0
        %1245 = vmatpush1.bf16.msra.mxu0 0
        %1246 = vmatprep.subr.bf16.mxu0 0
        %1247 = vmatpush1.bf16.msra.mxu0 0
        %1248 = vmatprep.mubr.bf16.mxu0 0
        %1249 = vmatmul.mubr.bf16.gmra.mrb[0].mxu0 %v1214
        %v1250 = vpop.f32.mrb[0].mxu0
        %v1251 = vadd.f32 %v1199, %v1250
        %v1252 = vpop.f32.mrb[0].mxu0
        %v1253 = vpop.f32.mrb[0].mxu0
        %v1254 = vpop.f32.mrb[0].mxu0
        %1255 = vdwg.mxu0
        %1257 = vrot.lane.b32.xlu0 %v1251, 112
        %v1258 = vpop.permute.xlu0 %1257
        %v1260 = vpack.c.bf16 %v1251, %v1251
        %v1261 = vpack.c.bf16 %v1258, %v1258
        %1263 = vrot.lane.b32.xlu0 %v1260, 96
        %v1264 = vpop.permute.xlu0 %1263
        %v1266 = vsel %vm684, %v1260, 0
        %v1269 = vsel %vm684, %v1264, 0
        %1271 = vmatprep.subr.bf16.mxu0 0
        %1272 = vmatpush1.bf16.xpose.msra.mxu0 %v1269
        %1273 = vmatprep.subr.bf16.mxu0 0
        %1274 = vmatpush1.bf16.xpose.msra.mxu0 0
        %1275 = vmatprep.subr.bf16.mxu0 0
        %1276 = vmatpush1.bf16.xpose.msra.mxu0 0
        %1277 = vmatprep.subr.bf16.mxu0 0
        %1278 = vmatpush1.bf16.xpose.msra.mxu0 0
        %1279 = vmatprep.subr.bf16.mxu0 0
        %1280 = vmatpush1.bf16.xpose.msra.mxu0 0
        %1281 = vmatprep.subr.bf16.mxu0 0
        %1282 = vmatpush1.bf16.xpose.msra.mxu0 0
        %1283 = vmatprep.subr.bf16.mxu0 0
        %1284 = vmatpush1.bf16.xpose.msra.mxu0 0
        %1285 = vmatprep.subr.bf16.mxu0 0
        %1286 = vmatpush1.bf16.xpose.msra.mxu0 0
        %1287 = vmatprep.subr.bf16.mxu0 0
        %1288 = vmatpush1.bf16.xpose.msra.mxu0 0
        %1289 = vmatprep.subr.bf16.mxu0 0
        %1290 = vmatpush1.bf16.xpose.msra.mxu0 0
        %1291 = vmatprep.subr.bf16.mxu0 0
        %1292 = vmatpush1.bf16.xpose.msra.mxu0 0
        %1293 = vmatprep.subr.bf16.mxu0 0
        %1294 = vmatpush1.bf16.xpose.msra.mxu0 0
        %1295 = vmatprep.subr.bf16.mxu0 0
        %1296 = vmatpush1.bf16.xpose.msra.mxu0 0
        %1297 = vmatprep.subr.bf16.mxu0 0
        %1298 = vmatpush1.bf16.xpose.msra.mxu0 0
        %1299 = vmatprep.subr.bf16.mxu0 0
        %1300 = vmatpush1.bf16.xpose.msra.mxu0 0
        %1301 = vmatprep.subr.bf16.mxu0 0
        %1302 = vmatpush1.bf16.xpose.msra.mxu0 0
        %1303 = vmatprep.mubr.bf16.mxu0 0
        %1304 = vmatmul.mubr.bf16.gmra.mrb[0].mxu0 %v1266
        %v1305 = vpop.f32.mrb[0].mxu0
        %v1306 = vadd.f32 %v606, %v1305
        %v1307 = vpop.f32.mrb[0].mxu0
        %v1308 = vpop.f32.mrb[0].mxu0
        %v1309 = vpop.f32.mrb[0].mxu0
        %1310 = vdwg.mxu0
        %1312 = vrot.lane.b32.xlu0 %v1261, 96
        %v1313 = vpop.permute.xlu0 %1312
        %v1315 = vsel %vm684, %v1261, 0
        %v1318 = vsel %vm684, %v1313, 0
        %1320 = vmatprep.subr.bf16.mxu0 0
        %1321 = vmatpush1.bf16.xpose.msra.mxu0 %v1318
        %1322 = vmatprep.subr.bf16.mxu0 0
        %1323 = vmatpush1.bf16.xpose.msra.mxu0 0
        %1324 = vmatprep.subr.bf16.mxu0 0
        %1325 = vmatpush1.bf16.xpose.msra.mxu0 0
        %1326 = vmatprep.subr.bf16.mxu0 0
        %1327 = vmatpush1.bf16.xpose.msra.mxu0 0
        %1328 = vmatprep.subr.bf16.mxu0 0
        %1329 = vmatpush1.bf16.xpose.msra.mxu0 0
        %1330 = vmatprep.subr.bf16.mxu0 0
        %1331 = vmatpush1.bf16.xpose.msra.mxu0 0
        %1332 = vmatprep.subr.bf16.mxu0 0
        %1333 = vmatpush1.bf16.xpose.msra.mxu0 0
        %1334 = vmatprep.subr.bf16.mxu0 0
        %1335 = vmatpush1.bf16.xpose.msra.mxu0 0
        %1336 = vmatprep.subr.bf16.mxu0 0
        %1337 = vmatpush1.bf16.xpose.msra.mxu0 0
        %1338 = vmatprep.subr.bf16.mxu0 0
        %1339 = vmatpush1.bf16.xpose.msra.mxu0 0
        %1340 = vmatprep.subr.bf16.mxu0 0
        %1341 = vmatpush1.bf16.xpose.msra.mxu0 0
        %1342 = vmatprep.subr.bf16.mxu0 0
        %1343 = vmatpush1.bf16.xpose.msra.mxu0 0
        %1344 = vmatprep.subr.bf16.mxu0 0
        %1345 = vmatpush1.bf16.xpose.msra.mxu0 0
        %1346 = vmatprep.subr.bf16.mxu0 0
        %1347 = vmatpush1.bf16.xpose.msra.mxu0 0
        %1348 = vmatprep.subr.bf16.mxu0 0
        %1349 = vmatpush1.bf16.xpose.msra.mxu0 0
        %1350 = vmatprep.subr.bf16.mxu0 0
        %1351 = vmatpush1.bf16.xpose.msra.mxu0 0
        %1352 = vmatprep.mubr.bf16.mxu0 0
        %1353 = vmatmul.mubr.bf16.gmra.mrb[0].mxu0 %v1315
        %v1354 = vpop.f32.mrb[0].mxu0
        %v1355 = vadd.f32 %v606, %v1354
        %v1356 = vpop.f32.mrb[0].mxu0
        %v1357 = vpop.f32.mrb[0].mxu0
        %v1358 = vpop.f32.mrb[0].mxu0
        %1359 = vdwg.mxu0
        %v1360 = vsel %vm780, %v1306, -inf
        %1361 = vmax.xlane.f32.xlu0 %v1360
        %v1362 = vpop.xlane.xlu0 %1361
        %v1363 = vsel %vm780, %v1355, -inf
        %1364 = vmax.xlane.f32.xlu0 %v1363
        %v1365 = vpop.xlane.xlu0 %1364
        %v1366 = vsub.f32 %v1306, %v1362
        %v1367 = vsub.f32 %v1355, %v1365
        %v1368 = vmul.f32 %v1366, 1.442695
        %v1369 = vpow.pop %v1368
        %v1370 = vmul.f32 %v1367, 1.442695
        %v1371 = vpow.pop %v1370
        %v1372 = vsel %vm780, %v1369, 0.0
        %1373 = vadd.xlane.f32.xlu0 %v1372
        %v1374 = vpop.xlane.xlu0 %1373
        %v1375 = vsel %vm780, %v1371, 0.0
        %1376 = vadd.xlane.f32.xlu0 %v1375
        %v1377 = vpop.xlane.xlu0 %1376
        %v1378 = vrcp.pop %v1374
        %v1379 = vrcp.pop %v1377
        %v1380 = vmul.f32 %v1369, %v1378
        %v1381 = vmul.f32 %v1371, %v1379
        %v1382 = vpack.c.bf16 %v1380, %v1380
        %v1383 = vpack.c.bf16 %v1381, %v1381
        %1384 = vrot.lane.b32.xlu0 %v1260, 64
        %v1385 = vpop.permute.xlu0 %1384
        %v1387 = vsel %vm780, %v1382, 0
        %v1390 = vsel %vm810, %v1385, 0
        %1392 = vmatprep.subr.bf16.mxu0 0
        %1393 = vmatpush1.bf16.msra.mxu0 %v1390
        %1394 = vmatprep.subr.bf16.mxu0 0
        %1395 = vmatpush1.bf16.msra.mxu0 0
        %1396 = vmatprep.subr.bf16.mxu0 0
        %1397 = vmatpush1.bf16.msra.mxu0 0
        %1398 = vmatprep.subr.bf16.mxu0 0
        %1399 = vmatpush1.bf16.msra.mxu0 0
        %1400 = vmatprep.subr.bf16.mxu0 0
        %1401 = vmatpush1.bf16.msra.mxu0 0
        %1402 = vmatprep.subr.bf16.mxu0 0
        %1403 = vmatpush1.bf16.msra.mxu0 0
        %1404 = vmatprep.subr.bf16.mxu0 0
        %1405 = vmatpush1.bf16.msra.mxu0 0
        %1406 = vmatprep.subr.bf16.mxu0 0
        %1407 = vmatpush1.bf16.msra.mxu0 0
        %1408 = vmatprep.subr.bf16.mxu0 0
        %1409 = vmatpush1.bf16.msra.mxu0 0
        %1410 = vmatprep.subr.bf16.mxu0 0
        %1411 = vmatpush1.bf16.msra.mxu0 0
        %1412 = vmatprep.subr.bf16.mxu0 0
        %1413 = vmatpush1.bf16.msra.mxu0 0
        %1414 = vmatprep.subr.bf16.mxu0 0
        %1415 = vmatpush1.bf16.msra.mxu0 0
        %1416 = vmatprep.subr.bf16.mxu0 0
        %1417 = vmatpush1.bf16.msra.mxu0 0
        %1418 = vmatprep.subr.bf16.mxu0 0
        %1419 = vmatpush1.bf16.msra.mxu0 0
        %1420 = vmatprep.subr.bf16.mxu0 0
        %1421 = vmatpush1.bf16.msra.mxu0 0
        %1422 = vmatprep.subr.bf16.mxu0 0
        %1423 = vmatpush1.bf16.msra.mxu0 0
        %1424 = vmatprep.mubr.bf16.mxu0 0
        %1425 = vmatmul.mubr.bf16.gmra.mrb[0].mxu0 %v1387
        %v1426 = vpop.f32.mrb[0].mxu0
        %v1427 = vadd.f32 0.0, %v1426
        %v1428 = vpop.f32.mrb[0].mxu0
        %v1429 = vpop.f32.mrb[0].mxu0
        %v1430 = vpop.f32.mrb[0].mxu0
        %1431 = vdwg.mxu0
        %1432 = vrot.lane.b32.xlu0 %v1261, 64
        %v1433 = vpop.permute.xlu0 %1432
        %v1435 = vsel %vm780, %v1383, 0
        %v1438 = vsel %vm810, %v1433, 0
        %1440 = vmatprep.subr.bf16.mxu0 0
        %1441 = vmatpush1.bf16.msra.mxu0 %v1438
        %1442 = vmatprep.subr.bf16.mxu0 0
        %1443 = vmatpush1.bf16.msra.mxu0 0
        %1444 = vmatprep.subr.bf16.mxu0 0
        %1445 = vmatpush1.bf16.msra.mxu0 0
        %1446 = vmatprep.subr.bf16.mxu0 0
        %1447 = vmatpush1.bf16.msra.mxu0 0
        %1448 = vmatprep.subr.bf16.mxu0 0
        %1449 = vmatpush1.bf16.msra.mxu0 0
        %1450 = vmatprep.subr.bf16.mxu0 0
        %1451 = vmatpush1.bf16.msra.mxu0 0
        %1452 = vmatprep.subr.bf16.mxu0 0
        %1453 = vmatpush1.bf16.msra.mxu0 0
        %1454 = vmatprep.subr.bf16.mxu0 0
        %1455 = vmatpush1.bf16.msra.mxu0 0
        %1456 = vmatprep.subr.bf16.mxu0 0
        %1457 = vmatpush1.bf16.msra.mxu0 0
        %1458 = vmatprep.subr.bf16.mxu0 0
        %1459 = vmatpush1.bf16.msra.mxu0 0
        %1460 = vmatprep.subr.bf16.mxu0 0
        %1461 = vmatpush1.bf16.msra.mxu0 0
        %1462 = vmatprep.subr.bf16.mxu0 0
        %1463 = vmatpush1.bf16.msra.mxu0 0
        %1464 = vmatprep.subr.bf16.mxu0 0
        %1465 = vmatpush1.bf16.msra.mxu0 0
        %1466 = vmatprep.subr.bf16.mxu0 0
        %1467 = vmatpush1.bf16.msra.mxu0 0
        %1468 = vmatprep.subr.bf16.mxu0 0
        %1469 = vmatpush1.bf16.msra.mxu0 0
        %1470 = vmatprep.subr.bf16.mxu0 0
        %1471 = vmatpush1.bf16.msra.mxu0 0
        %1472 = vmatprep.mubr.bf16.mxu0 0
        %1473 = vmatmul.mubr.bf16.gmra.mrb[0].mxu0 %v1435
        %v1474 = vpop.f32.mrb[0].mxu0
        %v1475 = vadd.f32 0.0, %v1474
        %v1476 = vpop.f32.mrb[0].mxu0
        %v1477 = vpop.f32.mrb[0].mxu0
        %v1478 = vpop.f32.mrb[0].mxu0
        %1479 = vdwg.mxu0
        %1481 = vrot.lane.b32.xlu0 %v1475, 16
        %v1482 = vpop.permute.xlu0 %1481
        %v1484 = vsel %vm684, %v1427, %v1482
        %v1485 = vpack.c.bf16 %v1484, %v1484
        %s1486 = scalar_lea.vmem %s3, 16
        %v1487 = vld [vmem:[%s1486] sm:$0xf]
        %v1488 = vld [vmem:[%s1486 + $0x4] sm:$0xf]
        %v1489 = vld [vmem:[%s1486 + $0x8] sm:$0xf]
        %v1490 = vld [vmem:[%s1486 + $0xc] sm:$0xf]
        %s1491 = scalar_lea.vmem [#allocation7], 1
        %v1492 = vld [vmem:[%s1491] sm:$0x1]
        %v1494 = vlaneseq
        %v1495 = vshrl.u32 %v1494, 7
        %v1496 = vsub.s32 0, %v1495
        %v1497 = vrot.slane %v1492, %v1496
        %v1503 = vunpack.c.l.b16 %v1487
        %v1504 = vunpack.c.l.b16 %v1488
        %v1505 = vunpack.c.l.b16 %v1489
        %v1506 = vunpack.c.l.b16 %v1490
        %v1507 = vpack.c.b16 %v1504, %v1503
        %v1508 = vpack.c.b16 %v1506, %v1505
        %v1512 = vsel %vm631, %v1485, 0
        %1514 = vmatprep.subr.bf16.mxu0 0
        %1515 = vmatpush1.bf16.msra.mxu0 %v1507
        %1516 = vmatprep.subr.bf16.mxu0 0
        %1517 = vmatpush1.bf16.msra.mxu0 %v1508
        %1518 = vmatprep.subr.bf16.mxu0 0
        %1519 = vmatpush1.bf16.msra.mxu0 0
        %1520 = vmatprep.subr.bf16.mxu0 0
        %1521 = vmatpush1.bf16.msra.mxu0 0
        %1522 = vmatprep.subr.bf16.mxu0 0
        %1523 = vmatpush1.bf16.msra.mxu0 0
        %1524 = vmatprep.subr.bf16.mxu0 0
        %1525 = vmatpush1.bf16.msra.mxu0 0
        %1526 = vmatprep.subr.bf16.mxu0 0
        %1527 = vmatpush1.bf16.msra.mxu0 0
        %1528 = vmatprep.subr.bf16.mxu0 0
        %1529 = vmatpush1.bf16.msra.mxu0 0
        %1530 = vmatprep.subr.bf16.mxu0 0
        %1531 = vmatpush1.bf16.msra.mxu0 0
        %1532 = vmatprep.subr.bf16.mxu0 0
        %1533 = vmatpush1.bf16.msra.mxu0 0
        %1534 = vmatprep.subr.bf16.mxu0 0
        %1535 = vmatpush1.bf16.msra.mxu0 0
        %1536 = vmatprep.subr.bf16.mxu0 0
        %1537 = vmatpush1.bf16.msra.mxu0 0
        %1538 = vmatprep.subr.bf16.mxu0 0
        %1539 = vmatpush1.bf16.msra.mxu0 0
        %1540 = vmatprep.subr.bf16.mxu0 0
        %1541 = vmatpush1.bf16.msra.mxu0 0
        %1542 = vmatprep.subr.bf16.mxu0 0
        %1543 = vmatpush1.bf16.msra.mxu0 0
        %1544 = vmatprep.subr.bf16.mxu0 0
        %1545 = vmatpush1.bf16.msra.mxu0 0
        %1546 = vmatprep.mubr.bf16.mxu0 0
        %1547 = vmatmul.mubr.bf16.gmra.mrb[0].mxu0 %v1512
        %v1548 = vpop.f32.mrb[0].mxu0
        %v1549 = vadd.f32 %v1497, %v1548
        %v1550 = vpop.f32.mrb[0].mxu0
        %v1551 = vpop.f32.mrb[0].mxu0
        %v1552 = vpop.f32.mrb[0].mxu0
        %1553 = vdwg.mxu0
        %v1554 = vadd.f32 %v1186, %v1549
        %s1555 = scalar_lea.vmem [#allocation8], 1
        %v1556 = vld [vmem:[%s1555] sm:$0x1]
        %s1557 = scalar_lea.vmem [#allocation10], 1
        %v1558 = vld [vmem:[%s1557] sm:$0x1]
        %v1559 = vsel %vm631, %v1554, 0.0
        %1560 = vadd.xlane.f32.xlu0 %v1559
        %v1561 = vpop.xlane.xlu0 %1560
        %v1562 = vmul.f32 %v1561, %v980
        %v1563 = vsub.f32 %v1554, %v1562
        %v1564 = vmul.f32 %v1563, %v1563
        %v1565 = vsel %vm631, %v1564, 0.0
        %1566 = vadd.xlane.f32.xlu0 %v1565
        %v1567 = vpop.xlane.xlu0 %1566
        %v1568 = vmul.f32 %v1567, %v980
        %v1569 = vadd.f32 %v1568, 1e-05
        %v1570 = vrsqrt.pop %v1569
        %v1571 = vmul.f32 %v1563, %v1570
        %v1573 = vlaneseq
        %v1574 = vshrl.u32 %v1573, 7
        %v1575 = vsub.s32 0, %v1574
        %v1576 = vrot.slane %v1556, %v1575
        %v1578 = vmul.f32 %v1571, %v1576
        %v1580 = vlaneseq
        %v1581 = vshrl.u32 %v1580, 7
        %v1582 = vsub.s32 0, %v1581
        %v1583 = vrot.slane %v1558, %v1582
        %v1585 = vadd.f32 %v1578, %v1583
        %v1586 = vpack.c.bf16 %v1585, %v1585
        %s1587 = scalar_lea.vmem %s7, 16
        %v1588 = vld [vmem:[%s1587] sm:$0xf]
        %v1589 = vld [vmem:[%s1587 + $0x4] sm:$0xf]
        %v1590 = vld [vmem:[%s1587 + $0x8] sm:$0xf]
        %v1591 = vld [vmem:[%s1587 + $0xc] sm:$0xf]
        %s1592 = scalar_lea.vmem [#allocation11], 1
        %v1593 = vld [vmem:[%s1592] sm:$0x1]
        %v1595 = vlaneseq
        %v1596 = vshrl.u32 %v1595, 7
        %v1597 = vsub.s32 0, %v1596
        %v1598 = vrot.slane %v1593, %v1597
        %v1604 = vunpack.c.l.b16 %v1588
        %v1605 = vunpack.c.l.b16 %v1589
        %v1606 = vunpack.c.l.b16 %v1590
        %v1607 = vunpack.c.l.b16 %v1591
        %v1608 = vpack.c.b16 %v1605, %v1604
        %v1609 = vpack.c.b16 %v1607, %v1606
        %v1613 = vsel %vm631, %v1586, 0
        %1615 = vmatprep.subr.bf16.mxu0 0
        %1616 = vmatpush1.bf16.msra.mxu0 %v1608
        %1617 = vmatprep.subr.bf16.mxu0 0
        %1618 = vmatpush1.bf16.msra.mxu0 %v1609
        %1619 = vmatprep.subr.bf16.mxu0 0
        %1620 = vmatpush1.bf16.msra.mxu0 0
        %1621 = vmatprep.subr.bf16.mxu0 0
        %1622 = vmatpush1.bf16.msra.mxu0 0
        %1623 = vmatprep.subr.bf16.mxu0 0
        %1624 = vmatpush1.bf16.msra.mxu0 0
        %1625 = vmatprep.subr.bf16.mxu0 0
        %1626 = vmatpush1.bf16.msra.mxu0 0
        %1627 = vmatprep.subr.bf16.mxu0 0
        %1628 = vmatpush1.bf16.msra.mxu0 0
        %1629 = vmatprep.subr.bf16.mxu0 0
        %1630 = vmatpush1.bf16.msra.mxu0 0
        %1631 = vmatprep.subr.bf16.mxu0 0
        %1632 = vmatpush1.bf16.msra.mxu0 0
        %1633 = vmatprep.subr.bf16.mxu0 0
        %1634 = vmatpush1.bf16.msra.mxu0 0
        %1635 = vmatprep.subr.bf16.mxu0 0
        %1636 = vmatpush1.bf16.msra.mxu0 0
        %1637 = vmatprep.subr.bf16.mxu0 0
        %1638 = vmatpush1.bf16.msra.mxu0 0
        %1639 = vmatprep.subr.bf16.mxu0 0
        %1640 = vmatpush1.bf16.msra.mxu0 0
        %1641 = vmatprep.subr.bf16.mxu0 0
        %1642 = vmatpush1.bf16.msra.mxu0 0
        %1643 = vmatprep.subr.bf16.mxu0 0
        %1644 = vmatpush1.bf16.msra.mxu0 0
        %1645 = vmatprep.subr.bf16.mxu0 0
        %1646 = vmatpush1.bf16.msra.mxu0 0
        %1647 = vmatprep.mubr.bf16.mxu0 0
        %1648 = vmatmul.mubr.bf16.gmra.mrb[0].mxu0 %v1613
        %v1649 = vpop.f32.mrb[0].mxu0
        %v1650 = vadd.f32 %v1598, %v1649
        %v1651 = vpop.f32.mrb[0].mxu0
        %v1652 = vpop.f32.mrb[0].mxu0
        %v1653 = vpop.f32.mrb[0].mxu0
        %1654 = vdwg.mxu0
        %v1655 = vmax.f32 %v1650, 0.0
        %v1656 = vpack.c.bf16 %v1655, %v1655
        %s1657 = scalar_lea.vmem %s9, 32
        %v1658 = vld [vmem:[%s1657] sm:$0xf]
        %v1659 = vld [vmem:[%s1657 + $0x4] sm:$0xf]
        %v1660 = vld [vmem:[%s1657 + $0x8] sm:$0xf]
        %v1661 = vld [vmem:[%s1657 + $0xc] sm:$0xf]
        %v1662 = vld [vmem:[%s1657 + $0x10] sm:$0xf]
        %v1663 = vld [vmem:[%s1657 + $0x14] sm:$0xf]
        %v1664 = vld [vmem:[%s1657 + $0x18] sm:$0xf]
        %v1665 = vld [vmem:[%s1657 + $0x1c] sm:$0xf]
        %s1666 = scalar_lea.vmem [#allocation13], 1
        %v1667 = vld [vmem:[%s1666] sm:$0x1]
        %v1669 = vlaneseq
        %v1670 = vshrl.u32 %v1669, 7
        %v1671 = vsub.s32 0, %v1670
        %v1672 = vrot.slane %v1667, %v1671
        %v1682 = vunpack.c.l.b16 %v1658
        %v1683 = vunpack.c.l.b16 %v1659
        %v1684 = vunpack.c.l.b16 %v1660
        %v1685 = vunpack.c.l.b16 %v1661
        %v1686 = vunpack.c.l.b16 %v1662
        %v1687 = vunpack.c.l.b16 %v1663
        %v1688 = vunpack.c.l.b16 %v1664
        %v1689 = vunpack.c.l.b16 %v1665
        %v1690 = vpack.c.b16 %v1683, %v1682
        %v1691 = vpack.c.b16 %v1685, %v1684
        %v1692 = vpack.c.b16 %v1687, %v1686
        %v1693 = vpack.c.b16 %v1689, %v1688
        %v1699 = vsel %vm1113, %v1656, 0
        %1701 = vmatprep.subr.bf16.mxu0 0
        %1702 = vmatpush1.bf16.msra.mxu0 %v1690
        %1703 = vmatprep.subr.bf16.mxu0 0
        %1704 = vmatpush1.bf16.msra.mxu0 %v1691
        %1705 = vmatprep.subr.bf16.mxu0 0
        %1706 = vmatpush1.bf16.msra.mxu0 %v1692
        %1707 = vmatprep.subr.bf16.mxu0 0
        %1708 = vmatpush1.bf16.msra.mxu0 %v1693
        %1709 = vmatprep.subr.bf16.mxu0 0
        %1710 = vmatpush1.bf16.msra.mxu0 0
        %1711 = vmatprep.subr.bf16.mxu0 0
        %1712 = vmatpush1.bf16.msra.mxu0 0
        %1713 = vmatprep.subr.bf16.mxu0 0
        %1714 = vmatpush1.bf16.msra.mxu0 0
        %1715 = vmatprep.subr.bf16.mxu0 0
        %1716 = vmatpush1.bf16.msra.mxu0 0
        %1717 = vmatprep.subr.bf16.mxu0 0
        %1718 = vmatpush1.bf16.msra.mxu0 0
        %1719 = vmatprep.subr.bf16.mxu0 0
        %1720 = vmatpush1.bf16.msra.mxu0 0
        %1721 = vmatprep.subr.bf16.mxu0 0
        %1722 = vmatpush1.bf16.msra.mxu0 0
        %1723 = vmatprep.subr.bf16.mxu0 0
        %1724 = vmatpush1.bf16.msra.mxu0 0
        %1725 = vmatprep.subr.bf16.mxu0 0
        %1726 = vmatpush1.bf16.msra.mxu0 0
        %1727 = vmatprep.subr.bf16.mxu0 0
        %1728 = vmatpush1.bf16.msra.mxu0 0
        %1729 = vmatprep.subr.bf16.mxu0 0
        %1730 = vmatpush1.bf16.msra.mxu0 0
        %1731 = vmatprep.subr.bf16.mxu0 0
        %1732 = vmatpush1.bf16.msra.mxu0 0
        %1733 = vmatprep.mubr.bf16.mxu0 0
        %1734 = vmatmul.mubr.bf16.gmra.mrb[0].mxu0 %v1699
        %v1735 = vpop.f32.mrb[0].mxu0
        %v1736 = vadd.f32 %v1672, %v1735
        %v1737 = vpop.f32.mrb[0].mxu0
        %v1738 = vpop.f32.mrb[0].mxu0
        %v1739 = vpop.f32.mrb[0].mxu0
        %1740 = vdwg.mxu0
        %v1741 = vadd.f32 %v1585, %v1736
        %s1742 = scalar_lea.vmem [#allocation14], 1
        %v1743 = vld [vmem:[%s1742] sm:$0x1]
        %s1744 = scalar_lea.vmem [#allocation16], 1
        %v1745 = vld [vmem:[%s1744] sm:$0x1]
        %v1746 = vsel %vm631, %v1741, 0.0
        %1747 = vadd.xlane.f32.xlu0 %v1746
        %v1748 = vpop.xlane.xlu0 %1747
        %v1749 = vmul.f32 %v1748, %v980
        %v1750 = vsub.f32 %v1741, %v1749
        %v1751 = vmul.f32 %v1750, %v1750
        %v1752 = vsel %vm631, %v1751, 0.0
        %1753 = vadd.xlane.f32.xlu0 %v1752
        %v1754 = vpop.xlane.xlu0 %1753
        %v1755 = vmul.f32 %v1754, %v980
        %v1756 = vadd.f32 %v1755, 1e-05
        %v1757 = vrsqrt.pop %v1756
        %v1758 = vmul.f32 %v1750, %v1757
        %v1760 = vlaneseq
        %v1761 = vshrl.u32 %v1760, 7
        %v1762 = vsub.s32 0, %v1761
        %v1763 = vrot.slane %v1743, %v1762
        %v1765 = vmul.f32 %v1758, %v1763
        %v1767 = vlaneseq
        %v1768 = vshrl.u32 %v1767, 7
        %v1769 = vsub.s32 0, %v1768
        %v1770 = vrot.slane %v1745, %v1769
        %v1772 = vadd.f32 %v1765, %v1770
        %v1773 = vpack.c.bf16 %v1772, %v1772
        %v1774 = vld [vmem:[%s13] sm:$0xf]
        %v1775 = vld [vmem:[%s13 + $0x4] sm:$0xf]
        %v1776 = vld [vmem:[%s13 + $0x8] sm:$0xf]
        %v1777 = vld [vmem:[%s13 + $0xc] sm:$0xf]
        %v1782 = vunpack.c.l.b16 %v1774
        %v1783 = vunpack.c.l.b16 %v1775
        %v1784 = vunpack.c.l.b16 %v1776
        %v1785 = vunpack.c.l.b16 %v1777
        %v1786 = vpack.c.b16 %v1783, %v1782
        %v1787 = vpack.c.b16 %v1785, %v1784
        %v1791 = vsel %vm631, %v1773, 0
        %1793 = vmatprep.subr.bf16.mxu0 0
        %1794 = vmatpush1.bf16.msra.mxu0 %v1786
        %1795 = vmatprep.subr.bf16.mxu0 0
        %1796 = vmatpush1.bf16.msra.mxu0 %v1787
        %1797 = vmatprep.subr.bf16.mxu0 0
        %1798 = vmatpush1.bf16.msra.mxu0 0
        %1799 = vmatprep.subr.bf16.mxu0 0
        %1800 = vmatpush1.bf16.msra.mxu0 0
        %1801 = vmatprep.subr.bf16.mxu0 0
        %1802 = vmatpush1.bf16.msra.mxu0 0
        %1803 = vmatprep.subr.bf16.mxu0 0
        %1804 = vmatpush1.bf16.msra.mxu0 0
        %1805 = vmatprep.subr.bf16.mxu0 0
        %1806 = vmatpush1.bf16.msra.mxu0 0
        %1807 = vmatprep.subr.bf16.mxu0 0
        %1808 = vmatpush1.bf16.msra.mxu0 0
        %1809 = vmatprep.subr.bf16.mxu0 0
        %1810 = vmatpush1.bf16.msra.mxu0 0
        %1811 = vmatprep.subr.bf16.mxu0 0
        %1812 = vmatpush1.bf16.msra.mxu0 0
        %1813 = vmatprep.subr.bf16.mxu0 0
        %1814 = vmatpush1.bf16.msra.mxu0 0
        %1815 = vmatprep.subr.bf16.mxu0 0
        %1816 = vmatpush1.bf16.msra.mxu0 0
        %1817 = vmatprep.subr.bf16.mxu0 0
        %1818 = vmatpush1.bf16.msra.mxu0 0
        %1819 = vmatprep.subr.bf16.mxu0 0
        %1820 = vmatpush1.bf16.msra.mxu0 0
        %1821 = vmatprep.subr.bf16.mxu0 0
        %1822 = vmatpush1.bf16.msra.mxu0 0
        %1823 = vmatprep.subr.bf16.mxu0 0
        %1824 = vmatpush1.bf16.msra.mxu0 0
        %1825 = vmatprep.mubr.bf16.mxu0 0
        %1826 = vmatmul.mubr.bf16.gmra.mrb[0].mxu0 %v1791
        %v1827 = vpop.f32.mrb[0].mxu0
        %v1828 = vadd.f32 0.0, %v1827
        %v1829 = vpop.f32.mrb[0].mxu0
        %v1830 = vpop.f32.mrb[0].mxu0
        %v1831 = vpop.f32.mrb[0].mxu0
        %1832 = vdwg.mxu0
        %1833 = vst [vmem:[%s598] sm:$0xff] %v1828
        %s1834 = sand.u32 %s342, 1
        %s1835 = scalar_lea.sflag [#allocation4], %s1834
        %s1836 = sand.u32 %s342, 1
        %s1837 = smul.addr %s1836, 8
        %s1838 = scalar_lea.vmem [#allocation17], %s1837
        // Predicated region
        $region113: #{tpu_custom_call.1} parent=75 // pred_check
          %p1839 = pneg %p352
        $region114: #{tpu_custom_call.1} parent=75 // pred_check_branch
          %1841 = sbr.rel (%p1839) target = $region116
        $region115: #{tpu_custom_call.1} parent=75 // pred_region
          %s1843 = ssub.s32 128, 128
          %1844 = vsyncadd %s1835, %s1843
          %s1845 = smul.addr %s35, 128
          %s1846 = scalar_lea.hbm %s14, %s1845
          %s1848 = sshll.u32 %s1838, 4
          %s1849 = int_to_ptr.vmem [resolvable:$true] %s1848
          %1851 = dma.vmem_to_hbm [thread:$0]  %s1849, 128, %s1846, %s1835
        $region116: #{tpu_custom_call.1} parent=75 // pred_fallthru
          _
      $region76: #{tpu_custom_call.1} parent=5 // pred_fallthru
        _
      %p1852 = scmp.le.s32.totalorder 2, %s30
      // Predicated region
      $region117: #{tpu_custom_call.1} parent=5 // pred_check
        %p1853 = pneg %p1852
      $region118: #{tpu_custom_call.1} parent=5 // pred_check_branch
        %1855 = sbr.rel (%p1853) target = $region120
      $region119: #{tpu_custom_call.1} parent=5 // pred_region
        %s1856 = ssub.s32 %s30, 2
        // Predicated region
        $region121: #{tpu_custom_call.1} parent=119 // pred_check
          %p1857 = pneg %p358
        $region122: #{tpu_custom_call.1} parent=119 // pred_check_branch
          %1859 = sbr.rel (%p1857) target = $region124
        $region123: #{tpu_custom_call.1} parent=119 // pred_region
          %s1860 = sand.u32 %s343, 1
          %s1861 = scalar_lea.sflag [#allocation4], %s1860
          %s1862 = sand.u32 %s343, 1
          %s1863 = smul.addr %s1862, 8
          %s1864 = scalar_lea.vmem [#allocation17], %s1863
          %1865 = dma.done %s1861, 128
        $region124: #{tpu_custom_call.1} parent=119 // pred_fallthru
          _
      $region120: #{tpu_custom_call.1} parent=5 // pred_fallthru
        _
    $region6: #{tpu_custom_call.1} parent=1 // loop_footer
      %s34 = sadd.s32 1, %s30
    $region7: #{tpu_custom_call.1} parent=1 // loop_footer_branch
      %29 = sbr.rel target = $region3
    $region8: #{tpu_custom_call.1} parent=1 // loop_exit
      _
    %1866 = vsyncpa [#allocation3], 1
    %s1867 = scalar_lea.sflag [#allocation3], 1
    %1868 = vsyncpa %s1867, 1
    %1869 = vsyncpa [#allocation6], 1
    %1870 = vsyncpa [#allocation9], 1
    %1871 = vsyncpa [#allocation12], 1
    %1872 = vsyncpa [#allocation15], 1
    %1873 = vsyncpa [#allocation4], 1
    %s1874 = scalar_lea.sflag [#allocation4], 1
    %1875 = vsyncpa %s1874, 1

</llo_original>
